<compile_context>
chip_gen: v5e
topology: v5e:2x2
jax: 0.10.0
libtpu: 0.0.40
codegen_flags: <defaults>
</compile_context>

<pallas_src>
import functools
import math

import jax
import jax.numpy as jnp
import numpy as np
from jax.experimental import pallas as pl
from jax.experimental.pallas import tpu as pltpu


def _round_up(x, m):
    return (x + m - 1) // m * m


def _cdiv(a, b):
    return (a + b - 1) // b


@functools.lru_cache(maxsize=None)
def _vmem_limit_bytes():
    try:
        info = pltpu.get_tpu_info()
        cap = getattr(info, "vmem_capacity_bytes", None)
        if cap:
            return int(min(cap * 3 // 4, 100 * 1024 * 1024))
    except Exception:
        pass
    return 48 * 1024 * 1024


def _cparams(sem):
    return pltpu.CompilerParams(dimension_semantics=sem,
                                vmem_limit_bytes=_vmem_limit_bytes())


# --------------------------------------------------------------------------
# Kernel 1: fused NHWC stride-1 'valid' convolution on a flattened image.
# Output flat row p = oh * Wp8 + ow; tap (kh, kw) contributes the matmul of the
# input slab starting at flat offset p + kh*Wp8 + kw with its (Cin, Cout)
# weight slice.  Columns ow >= OW are garbage and sliced off by the wrapper.
# --------------------------------------------------------------------------
def _make_conv_kernel(offsets, tm, has_halo):
    if has_halo:
        def kernel(x_ref, xh_ref, w_ref, o_ref, s_ref):
            # merge the row tile and its halo once; taps are static slices.
            s_ref[0:tm, :] = x_ref[...]
            s_ref[tm:, :] = xh_ref[...]
            acc = None
            for t, off in enumerate(offsets):
                a = s_ref[off:off + tm, :]
                p = jnp.dot(a, w_ref[t], preferred_element_type=jnp.float32)
                acc = p if acc is None else acc + p
            o_ref[...] = acc.astype(o_ref.dtype)
        return kernel

    def kernel(x_ref, w_ref, o_ref):
        acc = None
        for t, _ in enumerate(offsets):
            p = jnp.dot(x_ref[...], w_ref[t], preferred_element_type=jnp.float32)
            acc = p if acc is None else acc + p
        o_ref[...] = acc.astype(o_ref.dtype)
    return kernel


def conv2d_nhwc(x, w_packed, khkw, out_dtype=jnp.bfloat16):
    """'valid' stride-1 conv.  x: (N,Hp,Wp,Cin); w_packed: (KH*KW,Cin,Cout) bf16."""
    kh_, kw_ = khkw
    N, Hp, Wp, Cin = x.shape
    T, kcin, Cout = w_packed.shape
    assert T == kh_ * kw_ and kcin == Cin
    OH, OW = Hp - kh_ + 1, Wp - kw_ + 1
    assert OH > 0 and OW > 0

    x = x.astype(jnp.bfloat16)

    Wp8 = _round_up(Wp, 8)                    # sublane-aligned flat row stride
    m_full = OH * Wp8                         # flat output rows (garbage cols kept)
    halo = (kh_ - 1) * Wp8 + (kw_ - 1)

    if halo == 0:
        TH = 0
        TM = min(_round_up(m_full, 8), 2048)
    else:
        TH = max(8, pl.next_power_of_2(halo + 1))   # strictly > halo
        TM = _round_up(min(max(m_full, 8), 2048), TH)
    n_row = _cdiv(m_full, TM)
    m_total = n_row * TM

    TN = Cout if Cout <= 256 else 256
    assert Cout % TN == 0
    n_ct = Cout // TN

    # One constant pad: align W to Wp8 and append enough zero image rows so the
    # row tiles and the trailing halo block are always in-bounds.
    need = m_total + TH
    pad_rows = _cdiv(max(0, need - Hp * Wp8), Wp8)
    xp = jnp.pad(x, ((0, 0), (0, pad_rows), (0, Wp8 - Wp), (0, 0)))
    x_flat = xp.reshape(N, (Hp + pad_rows) * Wp8, Cin)

    offsets = tuple(kh * Wp8 + kw for kh in range(kh_) for kw in range(kw_))
    kernel = _make_conv_kernel(offsets, TM, halo > 0)

    in_specs = [pl.BlockSpec((None, TM, Cin), lambda n, c, r: (n, r, 0))]
    operands = [x_flat]
    if halo > 0:
        nh = TM // TH
        in_specs.append(
            pl.BlockSpec((None, TH, Cin), lambda n, c, r: (n, (r + 1) * nh, 0)))
        operands.append(x_flat)
    # full packed weight stays VMEM-resident across n / row tiles.
    in_specs.append(pl.BlockSpec((T, Cin, TN), lambda n, c, r: (0, 0, c)))
    operands.append(w_packed)

    scratch = [pltpu.VMEM((TM + TH, Cin), jnp.bfloat16)] if halo > 0 else []

    out = pl.pallas_call(
        kernel,
        out_shape=jax.ShapeDtypeStruct((N, m_total, Cout), out_dtype),
        grid=(N, n_ct, n_row),
        in_specs=in_specs,
        out_specs=pl.BlockSpec((None, TM, TN), lambda n, c, r: (n, r, c)),
        scratch_shapes=scratch,
        compiler_params=_cparams(("parallel", "parallel", "parallel")),
    )(*operands)

    return out[:, :OH * Wp8, :].reshape(N, OH, Wp8, Cout)[:, :, :OW, :]


# --------------------------------------------------------------------------
# Kernel 2/3: spatially-tiled InstanceNorm2d(affine) [+ residual] [+ ReLU].
# Pass 1 accumulates per-channel sum / sum^2; pass 2 streams the normalization.
# --------------------------------------------------------------------------
def _in_stats_kernel(x_ref, s_ref):
    @pl.when(pl.program_id(2) == 0)
    def _():
        s_ref[...] = jnp.zeros_like(s_ref)
    x = x_ref[...].astype(jnp.float32)                      # (TP, TC)
    s_ref[0:1, :] += jnp.sum(x, axis=0, keepdims=True)
    s_ref[1:2, :] += jnp.sum(x * x, axis=0, keepdims=True)


def _in_apply_kernel(*refs, inv_n, eps, relu, has_res):
    if has_res:
        x_ref, s_ref, g_ref, b_ref, r_ref, o_ref = refs
    else:
        x_ref, s_ref, g_ref, b_ref, o_ref = refs
        r_ref = None
    x = x_ref[...].astype(jnp.float32)                      # (TP, TC)
    mean = s_ref[0:1, :] * inv_n                            # (1, TC)
    var = s_ref[1:2, :] * inv_n - mean * mean               # biased var (PyTorch IN)
    scale = g_ref[...] * jax.lax.rsqrt(var + eps)
    shift = b_ref[...] - mean * scale
    y = x * scale + shift
    if has_res:
        y = y + r_ref[...].astype(jnp.float32)
    if relu:
        y = jnp.maximum(y, 0.0)
    o_ref[...] = y.astype(o_ref.dtype)


def instance_norm(x, gamma, beta, *, relu=False, residual=None, eps=1e-5,
                  out_dtype=jnp.bfloat16):
    N, H, W, C = x.shape
    P = H * W
    TC = C if C <= 128 else 128
    assert C % TC == 0
    n_ct = C // TC

    x2 = x.reshape(N, P, C)
    r2 = residual.reshape(N, P, C) if residual is not None else None

    if P <= 4096:
        TP, n_sp, P_pad = P, 1, P
    else:
        TP = 2048
        n_sp = _cdiv(P, TP)
        P_pad = n_sp * TP
        if P_pad != P:                      # zero rows are harmless for the sums
            x2 = jnp.pad(x2, ((0, 0), (0, P_pad - P), (0, 0)))
            if r2 is not None:
                r2 = jnp.pad(r2, ((0, 0), (0, P_pad - P), (0, 0)))

    g2 = gamma.reshape(1, C).astype(jnp.float32)
    b2 = beta.reshape(1, C).astype(jnp.float32)

    x_spec = pl.BlockSpec((None, TP, TC), lambda n, c, s: (n, s, c))
    s_spec = pl.BlockSpec((None, 2, TC), lambda n, c, s: (n, 0, c))

    stats = pl.pallas_call(
        _in_stats_kernel,
        out_shape=jax.ShapeDtypeStruct((N, 2, C), jnp.float32),
        grid=(N, n_ct, n_sp),
        in_specs=[x_spec],
        out_specs=s_spec,
        compiler_params=_cparams(("parallel", "parallel", "arbitrary")),
    )(x2)

    kernel = functools.partial(_in_apply_kernel, inv_n=1.0 / P, eps=eps,
                               relu=relu, has_res=r2 is not None)
    in_specs = [x_spec, s_spec,
                pl.BlockSpec((1, TC), lambda n, c, s: (0, c)),
                pl.BlockSpec((1, TC), lambda n, c, s: (0, c))]
    operands = [x2, stats, g2, b2]
    if r2 is not None:
        in_specs.append(x_spec)
        operands.append(r2)

    y = pl.pallas_call(
        kernel,
        out_shape=jax.ShapeDtypeStruct((N, P_pad, C), out_dtype),
        grid=(N, n_ct, n_sp),
        in_specs=in_specs,
        out_specs=x_spec,
        compiler_params=_cparams(("parallel", "parallel", "parallel")),
    )(*operands)

    if P_pad != P:
        y = y[:, :P, :]
    return y.reshape(N, H, W, C)


# --------------------------------------------------------------------------
# layer wrappers (NHWC, bf16 activations)
# --------------------------------------------------------------------------
def conv1_layer(x, w_col, k=7):
    """ReflectionPad2d(5) + conv1 (Cin=2, 7x7) as a dense K=98 matmul (im2col)."""
    x = jnp.pad(x, ((0, 0), (5, 5), (5, 5), (0, 0)), mode="reflect")
    N, Hp, Wp, C = x.shape
    OH, OW = Hp - k + 1, Wp - k + 1
    cols = [x[:, i:i + OH, j:j + OW, :] for i in range(k) for j in range(k)]
    xcol = jnp.concatenate(cols, axis=-1)                   # (N, OH, OW, k*k*Cin)
    return conv2d_nhwc(xcol, w_col, (1, 1))


def conv_layer_s1(x, w_packed, k):
    """ConvLayer(k, stride=1, padding=True): reflect-pad k//2 + valid conv."""
    p = k // 2
    x = jnp.pad(x, ((0, 0), (p, p), (p, p), (0, 0)), mode="reflect")
    return conv2d_nhwc(x, w_packed, (k, k))


def conv_layer_s2(x, w_packed_s2):
    """ConvLayer(k=3, stride=2): stride-2 conv computed as a stride-1 2x2 conv
    over the space-to-depth (phase-packed) input — no full-res compute."""
    x = jnp.pad(x, ((0, 0), (1, 1), (1, 1), (0, 0)), mode="reflect")
    N, Hp, Wp, C = x.shape
    x = jnp.pad(x, ((0, 0), (0, Hp % 2), (0, Wp % 2), (0, 0)))  # never read by valid outs
    Hp2, Wp2 = x.shape[1], x.shape[2]
    xs = x.reshape(N, Hp2 // 2, 2, Wp2 // 2, 2, C)
    xs = xs.transpose(0, 1, 3, 2, 4, 5).reshape(N, Hp2 // 2, Wp2 // 2, 4 * C)
    return conv2d_nhwc(xs, w_packed_s2, (2, 2))


def deconv_layer(x, w_packed_ph):
    """ConvTranspose2d(k=3, s=2, p=1) via sub-pixel (output-phase) decomposition:
    one stride-1 2x2 conv producing all 4 phases as channels, then depth-to-space."""
    N, H, W, C = x.shape
    xz = jnp.pad(x, ((0, 0), (0, 1), (0, 1), (0, 0)))
    y4 = conv2d_nhwc(xz, w_packed_ph, (2, 2))               # (N, H, W, 4*Cout)
    Cout = y4.shape[-1] // 4
    y = y4.reshape(N, H, W, 2, 2, Cout).transpose(0, 1, 3, 2, 4, 5)
    y = y.reshape(N, 2 * H, 2 * W, Cout)
    return y[:, :2 * H - 1, :2 * W - 1, :]


def final_conv(x, w_packed, bias, k=7):
    """ReflectionPad2d((3,2,3,2)) + 7x7 conv; Cout padded to 128 for lane-dense
    stores, sliced back to 2 channels; the only bias not cancelled by an IN."""
    x = jnp.pad(x, ((0, 0), (3, 2), (3, 2), (0, 0)), mode="reflect")
    y = conv2d_nhwc(x, w_packed, (k, k), out_dtype=jnp.float32)
    return y[..., :bias.shape[0]] + bias.reshape(1, 1, 1, -1)


# --------------------------------------------------------------------------
# init-time weight packing (all reshapes/flips happen once, off the hot path)
# --------------------------------------------------------------------------
def _pack_conv(w):                       # (Cout,Cin,KH,KW) -> (KH*KW, Cin, Cout)
    co, ci, kh, kw = w.shape
    return np.transpose(w, (2, 3, 1, 0)).reshape(kh * kw, ci, co)


def _pack_conv_1x1col(w):                # (Cout,Cin,KH,KW) -> (1, KH*KW*Cin, Cout)
    co, ci, kh, kw = w.shape
    return np.transpose(w, (2, 3, 1, 0)).reshape(1, kh * kw * ci, co)


def _pack_conv_stride2(w):               # stride-2 3x3 -> 2x2 conv on s2d input
    co, ci, K, _ = w.shape
    out = np.zeros((2, 2, 2, 2, ci, co), w.dtype)           # [a,b,ph,pw,ci,co]
    for a in range(2):
        for b in range(2):
            for ph in range(2):
                for pw in range(2):
                    kh, kw = 2 * a + ph, 2 * b + pw
                    if kh < K and kw < K:
                        out[a, b, ph, pw] = np.transpose(w[:, :, kh, kw])
    return out.reshape(4, 4 * ci, co)


def _pack_deconv_phases(w):              # ConvTranspose (Cin,Cout,3,3) -> (4,Cin,4*Cout)
    ci, co = w.shape[:2]
    out = np.zeros((2, 2, ci, 2, 2, co), w.dtype)           # [a,b,ci,rp,cp,co]
    out[0, 0, :, 0, 0] = w[:, :, 1, 1]
    out[0, 0, :, 0, 1] = w[:, :, 1, 2]
    out[0, 1, :, 0, 1] = w[:, :, 1, 0]
    out[0, 0, :, 1, 0] = w[:, :, 2, 1]
    out[1, 0, :, 1, 0] = w[:, :, 0, 1]
    out[0, 0, :, 1, 1] = w[:, :, 2, 2]
    out[0, 1, :, 1, 1] = w[:, :, 2, 0]
    out[1, 0, :, 1, 1] = w[:, :, 0, 2]
    out[1, 1, :, 1, 1] = w[:, :, 0, 0]
    return out.reshape(4, ci, 4 * co)


def init_params(key, nc):
    c1, c2, c4 = nc, nc * 2, nc * 4
    bf = lambda a: jnp.asarray(a, jnp.bfloat16)

    def norm_w(k, shape, fan_in):
        return np.asarray(jax.random.normal(k, shape, jnp.float32)) / math.sqrt(fan_in)

    def in_p(k, c):
        kg, kb = jax.random.split(k)
        return (1.0 + 0.1 * jax.random.normal(kg, (c,), jnp.float32),
                0.1 * jax.random.normal(kb, (c,), jnp.float32))

    keys = iter(jax.random.split(key, 64))
    p = {}
    p["conv1"] = bf(_pack_conv_1x1col(norm_w(next(keys), (c1, 2, 7, 7), 2 * 49)))
    p["in1"] = in_p(next(keys), c1)
    p["conv2"] = bf(_pack_conv_stride2(norm_w(next(keys), (c2, c1, 3, 3), c1 * 9)))
    p["in2"] = in_p(next(keys), c2)
    p["conv3"] = bf(_pack_conv_stride2(norm_w(next(keys), (c4, c2, 3, 3), c2 * 9)))
    p["in3"] = in_p(next(keys), c4)
    for r in range(1, 10):
        p[f"res{r}_conv1"] = bf(_pack_conv(norm_w(next(keys), (c4, c4, 3, 3), c4 * 9)))
        p[f"res{r}_in1"] = in_p(next(keys), c4)
        p[f"res{r}_conv2"] = bf(_pack_conv(norm_w(next(keys), (c4, c4, 3, 3), c4 * 9)))
        p[f"res{r}_in2"] = in_p(next(keys), c4)
    p["deconv1"] = bf(_pack_deconv_phases(norm_w(next(keys), (c4, c2, 3, 3), c4 * 9)))
    p["in4"] = in_p(next(keys), c2)
    p["deconv2"] = bf(_pack_deconv_phases(norm_w(next(keys), (c2, c1, 3, 3), c2 * 9)))
    p["in5"] = in_p(next(keys), c1)
    w_last = _pack_conv(norm_w(next(keys), (2, c1, 7, 7), c1 * 49))   # (49, c1, 2)
    p["deconv3"] = bf(np.pad(w_last, ((0, 0), (0, 0), (0, 128 - 2))))  # lane-dense
    p["deconv3_b"] = 0.01 * jax.random.normal(next(keys), (2,), jnp.float32)
    return p


# --------------------------------------------------------------------------
# forward (matches generator.forward)
# --------------------------------------------------------------------------
def generator_forward(params, x):
    """x: (N, 2, H, W) float32 NCHW.  Returns (N, 2, H, W) float32 NCHW."""
    y = jnp.transpose(x, (0, 2, 3, 1)).astype(jnp.bfloat16)   # NHWC bf16

    # conv biases that feed an InstanceNorm cancel under mean subtraction.
    y = conv1_layer(y, params["conv1"])
    y = instance_norm(y, *params["in1"], relu=True)

    y = conv_layer_s2(y, params["conv2"])
    y = instance_norm(y, *params["in2"], relu=True)

    y = conv_layer_s2(y, params["conv3"])
    y = instance_norm(y, *params["in3"], relu=True)

    for r in range(1, 10):
        res = y
        t = conv_layer_s1(y, params[f"res{r}_conv1"], 3)
        t = instance_norm(t, *params[f"res{r}_in1"], relu=True)
        t = conv_layer_s1(t, params[f"res{r}_conv2"], 3)
        y = instance_norm(t, *params[f"res{r}_in2"], relu=False, residual=res)

    y = deconv_layer(y, params["deconv1"])
    y = instance_norm(y, *params["in4"], relu=True)

    y = deconv_layer(y, params["deconv2"])
    y = instance_norm(y, *params["in5"], relu=True)

    y = final_conv(y, params["deconv3"], params["deconv3_b"])
    return jnp.transpose(y, (0, 3, 1, 2))


if __name__ == "__main__":
    key = jax.random.PRNGKey(0)
    kx, kp, kc = jax.random.split(key, 3)
    k1, k2, k3, k4, k5, k6, k7 = jax.random.split(kc, 7)

    def _q(a):  # bf16-round but keep f32 for the XLA references
        return a.astype(jnp.bfloat16).astype(jnp.float32)

    dn = ("NHWC", "HWIO", "NHWC")

    # 1) stride-1 3x3 conv (halo'd row-tiling path)
    xc = _q(jax.random.normal(k1, (1, 9, 11, 16), jnp.float32))
    wc = _q(jax.random.normal(k2, (8, 16, 3, 3), jnp.float32) / math.sqrt(16 * 9))
    got = conv2d_nhwc(xc, jnp.asarray(_pack_conv(np.asarray(wc)), jnp.bfloat16),
                      (3, 3), out_dtype=jnp.float32)
    want = jax.lax.conv_general_dilated(xc, jnp.transpose(wc, (2, 3, 1, 0)),
                                        (1, 1), "VALID", dimension_numbers=dn)
    assert jnp.allclose(got, want, atol=5e-2, rtol=5e-2), "conv check failed"

    # 2) stride-2 conv via space-to-depth
    xs = _q(jax.random.normal(k3, (1, 9, 11, 8), jnp.float32))
    ws = _q(jax.random.normal(k4, (16, 8, 3, 3), jnp.float32) / math.sqrt(8 * 9))
    got = conv_layer_s2(
        xs, jnp.asarray(_pack_conv_stride2(np.asarray(ws)), jnp.bfloat16)
    ).astype(jnp.float32)
    xs_p = jnp.pad(xs, ((0, 0), (1, 1), (1, 1), (0, 0)), mode="reflect")
    want = jax.lax.conv_general_dilated(xs_p, jnp.transpose(ws, (2, 3, 1, 0)),
                                        (2, 2), "VALID", dimension_numbers=dn)
    assert jnp.allclose(got, want, atol=8e-2, rtol=8e-2), "stride-2 conv check failed"

    # 3) ConvTranspose2d(k=3, s=2, p=1) via sub-pixel phases
    xd = _q(jax.random.normal(k5, (1, 5, 6, 8), jnp.float32))
    wd = _q(jax.random.normal(k6, (8, 16, 3, 3), jnp.float32) / math.sqrt(8 * 9))
    got = deconv_layer(
        xd, jnp.asarray(_pack_deconv_phases(np.asarray(wd)), jnp.bfloat16)
    ).astype(jnp.float32)
    wref = jnp.transpose(jnp.flip(wd, (2, 3)), (2, 3, 0, 1))
    want = jax.lax.conv_general_dilated(xd, wref, (1, 1), ((1, 1), (1, 1)),
                                        lhs_dilation=(2, 2), dimension_numbers=dn)
    assert jnp.allclose(got, want, atol=8e-2, rtol=8e-2), "deconv check failed"

    # 4) spatially tiled InstanceNorm (multi-tile accumulation path)
    xn = jax.random.normal(k7, (1, 72, 72, 8), jnp.float32)
    g = 1.0 + 0.1 * jax.random.normal(k1, (8,), jnp.float32)
    b = 0.1 * jax.random.normal(k2, (8,), jnp.float32)
    got = instance_norm(xn, g, b, relu=True, out_dtype=jnp.float32)
    mu = jnp.mean(xn, axis=(1, 2), keepdims=True)
    va = jnp.mean((xn - mu) ** 2, axis=(1, 2), keepdims=True)
    want = jnp.maximum((xn - mu) * jax.lax.rsqrt(va + 1e-5) * g + b, 0.0)
    assert jnp.allclose(got, want, atol=2e-2, rtol=2e-2), "instance-norm check failed"

    # --- full generator forward at small shapes ---
    nc = 8  # small num_channels for the test (module default is 64)
    x = jax.random.normal(kx, (2, 2, 16, 16), jnp.float32)   # (N, 2, H, W)
    params = init_params(kp, nc)

    fwd = jax.jit(generator_forward)
    y = jax.block_until_ready(fwd(params, x))
    assert y.shape == (2, 2, 16, 16), y.shape
    assert bool(jnp.all(jnp.isfinite(y)))
    print("KERNEL_OK")
</pallas_src>

<mosaic_0001>
module attributes {stable_mosaic.version = 11 : i64} {
  func.func @kernel(%arg0: i32, %arg1: i32, %arg2: i32, %arg3: memref<1x128x16xbf16, #tpu.memory_space<vmem>>, %arg4: memref<1x64x16xbf16, #tpu.memory_space<vmem>>, %arg5: memref<9x16x8xbf16, #tpu.memory_space<vmem>>, %arg6: memref<1x128x8xf32, #tpu.memory_space<vmem>>, %arg7: memref<192x16xbf16, #tpu.memory_space<vmem>>) attributes {dimension_semantics = [#tpu.dimension_semantics<parallel>, #tpu.dimension_semantics<parallel>, #tpu.dimension_semantics<parallel>], iteration_bounds = array<i64: 1, 1, 1>, scalar_prefetch = 0 : i64, scratch_operands = 1 : i64, tpu.core_type = #tpu.core_type<tc>, window_params = [{transform_indices = @transform_0, window_bounds = array<i64: 1, 128, 16>}, {transform_indices = @transform_1, window_bounds = array<i64: 1, 64, 16>}, {transform_indices = @transform_2, window_bounds = array<i64: 9, 16, 8>}, {transform_indices = @transform_3, window_bounds = array<i64: 1, 128, 8>}]} {
    %c0 = arith.constant 0 : index
    %c0_0 = arith.constant 0 : index
    %c0_1 = arith.constant 0 : index
    %0 = vector.load %arg3[%c0, %c0_0, %c0_1] : memref<1x128x16xbf16, #tpu.memory_space<vmem>>, vector<1x128x16xbf16>
    %1 = vector.shape_cast %0 : vector<1x128x16xbf16> to vector<128x16xbf16>
    %c0_2 = arith.constant 0 : index
    %c0_3 = arith.constant 0 : index
    %2 = vector.load %arg7[%c0_2, %c0_3] : memref<192x16xbf16, #tpu.memory_space<vmem>>, vector<128x16xbf16>
    tpu.vector_store %arg7[%c0_2, %c0_3], %1 {strides = array<i32>} : memref<192x16xbf16, #tpu.memory_space<vmem>>, vector<128x16xbf16>,
    %c0_4 = arith.constant 0 : index
    %c0_5 = arith.constant 0 : index
    %c0_6 = arith.constant 0 : index
    %3 = vector.load %arg4[%c0_4, %c0_5, %c0_6] : memref<1x64x16xbf16, #tpu.memory_space<vmem>>, vector<1x64x16xbf16>
    %4 = vector.shape_cast %3 : vector<1x64x16xbf16> to vector<64x16xbf16>
    %c128 = arith.constant 128 : index
    %c0_7 = arith.constant 0 : index
    %5 = vector.load %arg7[%c128, %c0_7] : memref<192x16xbf16, #tpu.memory_space<vmem>>, vector<64x16xbf16>
    tpu.vector_store %arg7[%c128, %c0_7], %4 {strides = array<i32>} : memref<192x16xbf16, #tpu.memory_space<vmem>>, vector<64x16xbf16>,
    %c0_8 = arith.constant 0 : index
    %c0_9 = arith.constant 0 : index
    %6 = vector.load %arg7[%c0_8, %c0_9] : memref<192x16xbf16, #tpu.memory_space<vmem>>, vector<128x16xbf16>
    %c0_10 = arith.constant 0 : index
    %c0_11 = arith.constant 0 : index
    %c0_12 = arith.constant 0 : index
    %7 = vector.load %arg5[%c0_10, %c0_11, %c0_12] : memref<9x16x8xbf16, #tpu.memory_space<vmem>>, vector<1x16x8xbf16>
    %8 = vector.shape_cast %7 : vector<1x16x8xbf16> to vector<16x8xbf16>
    %cst = arith.constant dense<0.000000e+00> : vector<128x8xf32>
    %9 = tpu.matmul %6, %8, %cst {dimension_numbers = #tpu.dot_dimension_numbers<[1], [0], [0], [1], [0, 0, 1, 1], [], []>} : vector<128x16xbf16>, vector<16x8xbf16>, vector<128x8xf32> -> vector<128x8xf32>
    %c1 = arith.constant 1 : index
    %c0_13 = arith.constant 0 : index
    %10 = vector.load %arg7[%c1, %c0_13] : memref<192x16xbf16, #tpu.memory_space<vmem>>, vector<128x16xbf16>
    %c1_14 = arith.constant 1 : index
    %c0_15 = arith.constant 0 : index
    %c0_16 = arith.constant 0 : index
    %11 = vector.load %arg5[%c1_14, %c0_15, %c0_16] : memref<9x16x8xbf16, #tpu.memory_space<vmem>>, vector<1x16x8xbf16>
    %12 = vector.shape_cast %11 : vector<1x16x8xbf16> to vector<16x8xbf16>
    %cst_17 = arith.constant dense<0.000000e+00> : vector<128x8xf32>
    %13 = tpu.matmul %10, %12, %cst_17 {dimension_numbers = #tpu.dot_dimension_numbers<[1], [0], [0], [1], [0, 0, 1, 1], [], []>} : vector<128x16xbf16>, vector<16x8xbf16>, vector<128x8xf32> -> vector<128x8xf32>
    %14 = arith.addf %9, %13 : vector<128x8xf32>
    %c2 = arith.constant 2 : index
    %c0_18 = arith.constant 0 : index
    %15 = vector.load %arg7[%c2, %c0_18] : memref<192x16xbf16, #tpu.memory_space<vmem>>, vector<128x16xbf16>
    %c2_19 = arith.constant 2 : index
    %c0_20 = arith.constant 0 : index
    %c0_21 = arith.constant 0 : index
    %16 = vector.load %arg5[%c2_19, %c0_20, %c0_21] : memref<9x16x8xbf16, #tpu.memory_space<vmem>>, vector<1x16x8xbf16>
    %17 = vector.shape_cast %16 : vector<1x16x8xbf16> to vector<16x8xbf16>
    %cst_22 = arith.constant dense<0.000000e+00> : vector<128x8xf32>
    %18 = tpu.matmul %15, %17, %cst_22 {dimension_numbers = #tpu.dot_dimension_numbers<[1], [0], [0], [1], [0, 0, 1, 1], [], []>} : vector<128x16xbf16>, vector<16x8xbf16>, vector<128x8xf32> -> vector<128x8xf32>
    %19 = arith.addf %14, %18 : vector<128x8xf32>
    %c16 = arith.constant 16 : index
    %c0_23 = arith.constant 0 : index
    %20 = vector.load %arg7[%c16, %c0_23] : memref<192x16xbf16, #tpu.memory_space<vmem>>, vector<128x16xbf16>
    %c3 = arith.constant 3 : index
    %c0_24 = arith.constant 0 : index
    %c0_25 = arith.constant 0 : index
    %21 = vector.load %arg5[%c3, %c0_24, %c0_25] : memref<9x16x8xbf16, #tpu.memory_space<vmem>>, vector<1x16x8xbf16>
    %22 = vector.shape_cast %21 : vector<1x16x8xbf16> to vector<16x8xbf16>
    %cst_26 = arith.constant dense<0.000000e+00> : vector<128x8xf32>
    %23 = tpu.matmul %20, %22, %cst_26 {dimension_numbers = #tpu.dot_dimension_numbers<[1], [0], [0], [1], [0, 0, 1, 1], [], []>} : vector<128x16xbf16>, vector<16x8xbf16>, vector<128x8xf32> -> vector<128x8xf32>
    %24 = arith.addf %19, %23 : vector<128x8xf32>
    %c17 = arith.constant 17 : index
    %c0_27 = arith.constant 0 : index
    %25 = vector.load %arg7[%c17, %c0_27] : memref<192x16xbf16, #tpu.memory_space<vmem>>, vector<128x16xbf16>
    %c4 = arith.constant 4 : index
    %c0_28 = arith.constant 0 : index
    %c0_29 = arith.constant 0 : index
    %26 = vector.load %arg5[%c4, %c0_28, %c0_29] : memref<9x16x8xbf16, #tpu.memory_space<vmem>>, vector<1x16x8xbf16>
    %27 = vector.shape_cast %26 : vector<1x16x8xbf16> to vector<16x8xbf16>
    %cst_30 = arith.constant dense<0.000000e+00> : vector<128x8xf32>
    %28 = tpu.matmul %25, %27, %cst_30 {dimension_numbers = #tpu.dot_dimension_numbers<[1], [0], [0], [1], [0, 0, 1, 1], [], []>} : vector<128x16xbf16>, vector<16x8xbf16>, vector<128x8xf32> -> vector<128x8xf32>
    %29 = arith.addf %24, %28 : vector<128x8xf32>
    %c18 = arith.constant 18 : index
    %c0_31 = arith.constant 0 : index
    %30 = vector.load %arg7[%c18, %c0_31] : memref<192x16xbf16, #tpu.memory_space<vmem>>, vector<128x16xbf16>
    %c5 = arith.constant 5 : index
    %c0_32 = arith.constant 0 : index
    %c0_33 = arith.constant 0 : index
    %31 = vector.load %arg5[%c5, %c0_32, %c0_33] : memref<9x16x8xbf16, #tpu.memory_space<vmem>>, vector<1x16x8xbf16>
    %32 = vector.shape_cast %31 : vector<1x16x8xbf16> to vector<16x8xbf16>
    %cst_34 = arith.constant dense<0.000000e+00> : vector<128x8xf32>
    %33 = tpu.matmul %30, %32, %cst_34 {dimension_numbers = #tpu.dot_dimension_numbers<[1], [0], [0], [1], [0, 0, 1, 1], [], []>} : vector<128x16xbf16>, vector<16x8xbf16>, vector<128x8xf32> -> vector<128x8xf32>
    %34 = arith.addf %29, %33 : vector<128x8xf32>
    %c32 = arith.constant 32 : index
    %c0_35 = arith.constant 0 : index
    %35 = vector.load %arg7[%c32, %c0_35] : memref<192x16xbf16, #tpu.memory_space<vmem>>, vector<128x16xbf16>
    %c6 = arith.constant 6 : index
    %c0_36 = arith.constant 0 : index
    %c0_37 = arith.constant 0 : index
    %36 = vector.load %arg5[%c6, %c0_36, %c0_37] : memref<9x16x8xbf16, #tpu.memory_space<vmem>>, vector<1x16x8xbf16>
    %37 = vector.shape_cast %36 : vector<1x16x8xbf16> to vector<16x8xbf16>
    %cst_38 = arith.constant dense<0.000000e+00> : vector<128x8xf32>
    %38 = tpu.matmul %35, %37, %cst_38 {dimension_numbers = #tpu.dot_dimension_numbers<[1], [0], [0], [1], [0, 0, 1, 1], [], []>} : vector<128x16xbf16>, vector<16x8xbf16>, vector<128x8xf32> -> vector<128x8xf32>
    %39 = arith.addf %34, %38 : vector<128x8xf32>
    %c33 = arith.constant 33 : index
    %c0_39 = arith.constant 0 : index
    %40 = vector.load %arg7[%c33, %c0_39] : memref<192x16xbf16, #tpu.memory_space<vmem>>, vector<128x16xbf16>
    %c7 = arith.constant 7 : index
    %c0_40 = arith.constant 0 : index
    %c0_41 = arith.constant 0 : index
    %41 = vector.load %arg5[%c7, %c0_40, %c0_41] : memref<9x16x8xbf16, #tpu.memory_space<vmem>>, vector<1x16x8xbf16>
    %42 = vector.shape_cast %41 : vector<1x16x8xbf16> to vector<16x8xbf16>
    %cst_42 = arith.constant dense<0.000000e+00> : vector<128x8xf32>
    %43 = tpu.matmul %40, %42, %cst_42 {dimension_numbers = #tpu.dot_dimension_numbers<[1], [0], [0], [1], [0, 0, 1, 1], [], []>} : vector<128x16xbf16>, vector<16x8xbf16>, vector<128x8xf32> -> vector<128x8xf32>
    %44 = arith.addf %39, %43 : vector<128x8xf32>
    %c34 = arith.constant 34 : index
    %c0_43 = arith.constant 0 : index
    %45 = vector.load %arg7[%c34, %c0_43] : memref<192x16xbf16, #tpu.memory_space<vmem>>, vector<128x16xbf16>
    %c8 = arith.constant 8 : index
    %c0_44 = arith.constant 0 : index
    %c0_45 = arith.constant 0 : index
    %46 = vector.load %arg5[%c8, %c0_44, %c0_45] : memref<9x16x8xbf16, #tpu.memory_space<vmem>>, vector<1x16x8xbf16>
    %47 = vector.shape_cast %46 : vector<1x16x8xbf16> to vector<16x8xbf16>
    %cst_46 = arith.constant dense<0.000000e+00> : vector<128x8xf32>
    %48 = tpu.matmul %45, %47, %cst_46 {dimension_numbers = #tpu.dot_dimension_numbers<[1], [0], [0], [1], [0, 0, 1, 1], [], []>} : vector<128x16xbf16>, vector<16x8xbf16>, vector<128x8xf32> -> vector<128x8xf32>
    %49 = arith.addf %44, %48 : vector<128x8xf32>
    %c0_47 = arith.constant 0 : index
    %c0_48 = arith.constant 0 : index
    %c0_49 = arith.constant 0 : index
    %50 = vector.load %arg6[%c0_47, %c0_48, %c0_49] : memref<1x128x8xf32, #tpu.memory_space<vmem>>, vector<1x128x8xf32>
    %51 = vector.shape_cast %50 : vector<1x128x8xf32> to vector<128x8xf32>
    %52 = vector.shape_cast %49 : vector<128x8xf32> to vector<1x128x8xf32>
    tpu.vector_store %arg6[%c0_47, %c0_48, %c0_49], %52 {strides = array<i32>} : memref<1x128x8xf32, #tpu.memory_space<vmem>>, vector<1x128x8xf32>,
    return
  }
  func.func @transform_0(%arg0: i32, %arg1: i32, %arg2: i32) -> (i32, i32, i32) {
    %c0_i32 = arith.constant 0 : i32
    %c0_i32_0 = arith.constant 0 : i32
    return %arg0, %arg2, %c0_i32 : i32, i32, i32
  }
  func.func @transform_1(%arg0: i32, %arg1: i32, %arg2: i32) -> (i32, i32, i32) {
    %c1_i32 = arith.constant 1 : i32
    %0 = arith.addi %arg2, %c1_i32 : i32
    %c2_i32 = arith.constant 2 : i32
    %1 = arith.muli %0, %c2_i32 : i32
    %c0_i32 = arith.constant 0 : i32
    %c0_i32_0 = arith.constant 0 : i32
    return %arg0, %1, %c0_i32 : i32, i32, i32
  }
  func.func @transform_2(%arg0: i32, %arg1: i32, %arg2: i32) -> (i32, i32, i32) {
    %c0_i32 = arith.constant 0 : i32
    %c0_i32_0 = arith.constant 0 : i32
    %c0_i32_1 = arith.constant 0 : i32
    return %c0_i32, %c0_i32_0, %arg1 : i32, i32, i32
  }
  func.func @transform_3(%arg0: i32, %arg1: i32, %arg2: i32) -> (i32, i32, i32) {
    %c0_i32 = arith.constant 0 : i32
    return %arg0, %arg2, %arg1 : i32, i32, i32
  }
}

</mosaic_0001>

<llo_original>
// kernel: tpu_custom_call.1
$region0: #{tpu_custom_call.1}
  #allocation0 [shape = 'u32[]', space=smem, size = 0x4, offset = 0x4, fixed_abs, tag = 'smem constant byte address 0x4 - core index']
  #allocation1 [shape = 'u32[72,128]{1,0:T(1,128)}', space=vmem, size = 0x9000, scoped, tag = 'internal scratch']
  #allocation2 [shape = 'bf16[192,16]{1,0:T(8,128)(2,1)}', space=vmem, size = 0xc000, scoped, tag = 'scratch operand']
  %s0 = inlined_call_operand.vmem [shape: bf16[1,192,16], index: 0, kind: input, shape index: {}]
  %s1 = inlined_call_operand.vmem [shape: bf16[1,192,16], index: 1, kind: input, shape index: {}]
  %s2 = inlined_call_operand.vmem [shape: bf16[9,16,8], index: 2, kind: input, shape index: {}]
  %s3 = inlined_call_operand.vmem [shape: f32[1,128,8], index: 3, kind: output, shape index: {}]
  %s4 = sld [smem:[#allocation0]]
  $region22: #{tpu_custom_call.1} parent=0
    _
  %s6 = ssub.s32 1, %s4
  %s7 = scalar_select 0, %s6, %s4
  // Predicated region
  $region2: #{tpu_custom_call.1} parent=0 // pred_check
    _
  $region3: #{tpu_custom_call.1} parent=0 // pred_check_branch
    %9 = sbr.rel (0) target = $region5
  $region4: #{tpu_custom_call.1} parent=0 // pred_region
    _
  $region5: #{tpu_custom_call.1} parent=0 // pred_fallthru
    _
  // Predicated region
  $region6: #{tpu_custom_call.1} parent=0 // pred_check
    _
  $region7: #{tpu_custom_call.1} parent=0 // pred_check_branch
    %11 = sbr.rel (0) target = $region9
  $region8: #{tpu_custom_call.1} parent=0 // pred_region
    %s12 = sadd.s32 0, 1
    %s13 = smul.u32 %s12, 2
    %s14 = smul.u32 8, %s13
    %p15 = scmp.lt.s32.totalorder %s14, 23
    %s16 = scalar_select %p15, %s14, 23
    %s17 = smul.addr %s16, 4
    %s18 = scalar_lea.vmem %s1, %s17
    %s19 = sadd.s32 0, 1
    %s20 = smul.u32 %s19, 2
    %s21 = smul.u32 8, %s20
  $region9: #{tpu_custom_call.1} parent=0 // pred_fallthru
    _
  // Predicated region
  $region10: #{tpu_custom_call.1} parent=0 // pred_check
    _
  $region11: #{tpu_custom_call.1} parent=0 // pred_check_branch
    %23 = sbr.rel (0) target = $region13
  $region12: #{tpu_custom_call.1} parent=0 // pred_region
    _
  $region13: #{tpu_custom_call.1} parent=0 // pred_fallthru
    _
  %s24 = sadd.s32 0, 1
  %s25 = smul.u32 %s24, 2
  %s26 = smul.u32 8, %s25
  %p27 = scmp.lt.s32.totalorder %s26, 23
  %s28 = scalar_select %p27, %s26, 23
  %s29 = smul.addr %s28, 4
  %s30 = scalar_lea.vmem %s1, %s29
  %s31 = sadd.s32 0, 1
  %s32 = smul.u32 %s31, 2
  %s33 = smul.u32 8, %s32
  %p34 = scmp.lt.s32.totalorder %s33, 23
  %s35 = scalar_select %p34, %s33, 23
  %s36 = smul.addr %s35, 4
  %s37 = scalar_lea.vmem %s1, %s36
  %s38 = sadd.s32 0, 1
  %s39 = smul.u32 %s38, 2
  %s40 = smul.u32 8, %s39
  %v42 = vld [vmem:[%s0] sm:$0xf]
  %v43 = vld [vmem:[%s0 + $0x4] sm:$0xf]
  %v44 = vld [vmem:[%s0 + $0x8] sm:$0xf]
  %v45 = vld [vmem:[%s0 + $0xc] sm:$0xf]
  %v46 = vld [vmem:[%s0 + $0x10] sm:$0xf]
  %v47 = vld [vmem:[%s0 + $0x14] sm:$0xf]
  %v48 = vld [vmem:[%s0 + $0x18] sm:$0xf]
  %v49 = vld [vmem:[%s0 + $0x1c] sm:$0xf]
  %v50 = vld [vmem:[%s0 + $0x20] sm:$0xf]
  %v51 = vld [vmem:[%s0 + $0x24] sm:$0xf]
  %v52 = vld [vmem:[%s0 + $0x28] sm:$0xf]
  %v53 = vld [vmem:[%s0 + $0x2c] sm:$0xf]
  %v54 = vld [vmem:[%s0 + $0x30] sm:$0xf]
  %v55 = vld [vmem:[%s0 + $0x34] sm:$0xf]
  %v56 = vld [vmem:[%s0 + $0x38] sm:$0xf]
  %v57 = vld [vmem:[%s0 + $0x3c] sm:$0xf]
  %vm58 = vcmask 125952
  %59 = vst.msk [vmem:[#allocation2] sm:$0xf] %vm58, %v42
  %60 = vst.msk [vmem:[#allocation2 + $0x4] sm:$0xf] %vm58, %v43
  %61 = vst.msk [vmem:[#allocation2 + $0x8] sm:$0xf] %vm58, %v44
  %62 = vst.msk [vmem:[#allocation2 + $0xc] sm:$0xf] %vm58, %v45
  %63 = vst.msk [vmem:[#allocation2 + $0x10] sm:$0xf] %vm58, %v46
  %64 = vst.msk [vmem:[#allocation2 + $0x14] sm:$0xf] %vm58, %v47
  %65 = vst.msk [vmem:[#allocation2 + $0x18] sm:$0xf] %vm58, %v48
  %66 = vst.msk [vmem:[#allocation2 + $0x1c] sm:$0xf] %vm58, %v49
  %67 = vst.msk [vmem:[#allocation2 + $0x20] sm:$0xf] %vm58, %v50
  %68 = vst.msk [vmem:[#allocation2 + $0x24] sm:$0xf] %vm58, %v51
  %69 = vst.msk [vmem:[#allocation2 + $0x28] sm:$0xf] %vm58, %v52
  %70 = vst.msk [vmem:[#allocation2 + $0x2c] sm:$0xf] %vm58, %v53
  %71 = vst.msk [vmem:[#allocation2 + $0x30] sm:$0xf] %vm58, %v54
  %72 = vst.msk [vmem:[#allocation2 + $0x34] sm:$0xf] %vm58, %v55
  %73 = vst.msk [vmem:[#allocation2 + $0x38] sm:$0xf] %vm58, %v56
  %74 = vst.msk [vmem:[#allocation2 + $0x3c] sm:$0xf] %vm58, %v57
  %v75 = vld [vmem:[%s37] sm:$0xf]
  %v76 = vld [vmem:[%s37 + $0x4] sm:$0xf]
  %v77 = vld [vmem:[%s37 + $0x8] sm:$0xf]
  %v78 = vld [vmem:[%s37 + $0xc] sm:$0xf]
  %v79 = vld [vmem:[%s37 + $0x10] sm:$0xf]
  %v80 = vld [vmem:[%s37 + $0x14] sm:$0xf]
  %v81 = vld [vmem:[%s37 + $0x18] sm:$0xf]
  %v82 = vld [vmem:[%s37 + $0x1c] sm:$0xf]
  %83 = vst.msk [vmem:[#allocation2 + $0x40] sm:$0xf] %vm58, %v75
  %84 = vst.msk [vmem:[#allocation2 + $0x44] sm:$0xf] %vm58, %v76
  %85 = vst.msk [vmem:[#allocation2 + $0x48] sm:$0xf] %vm58, %v77
  %86 = vst.msk [vmem:[#allocation2 + $0x4c] sm:$0xf] %vm58, %v78
  %87 = vst.msk [vmem:[#allocation2 + $0x50] sm:$0xf] %vm58, %v79
  %88 = vst.msk [vmem:[#allocation2 + $0x54] sm:$0xf] %vm58, %v80
  %89 = vst.msk [vmem:[#allocation2 + $0x58] sm:$0xf] %vm58, %v81
  %90 = vst.msk [vmem:[#allocation2 + $0x5c] sm:$0xf] %vm58, %v82
  %v91 = vld [vmem:[#allocation2] sm:$0xf]
  %v92 = vld [vmem:[#allocation2 + $0x4] sm:$0xf]
  %v93 = vld [vmem:[#allocation2 + $0x8] sm:$0xf]
  %v94 = vld [vmem:[#allocation2 + $0xc] sm:$0xf]
  %v95 = vld [vmem:[#allocation2 + $0x10] sm:$0xf]
  %v96 = vld [vmem:[#allocation2 + $0x14] sm:$0xf]
  %v97 = vld [vmem:[#allocation2 + $0x18] sm:$0xf]
  %v98 = vld [vmem:[#allocation2 + $0x1c] sm:$0xf]
  %v99 = vld [vmem:[#allocation2 + $0x20] sm:$0xf]
  %v100 = vld [vmem:[#allocation2 + $0x24] sm:$0xf]
  %v101 = vld [vmem:[#allocation2 + $0x28] sm:$0xf]
  %v102 = vld [vmem:[#allocation2 + $0x2c] sm:$0xf]
  %v103 = vld [vmem:[#allocation2 + $0x30] sm:$0xf]
  %v104 = vld [vmem:[#allocation2 + $0x34] sm:$0xf]
  %v105 = vld [vmem:[#allocation2 + $0x38] sm:$0xf]
  %v106 = vld [vmem:[#allocation2 + $0x3c] sm:$0xf]
  %v107 = vld [vmem:[%s2] sm:$0xf]
  %v108 = vld [vmem:[%s2 + $0x4] sm:$0xf]
  %v109 = vld [vmem:[#allocation2 + $0x40] sm:$0x1]
  %s110 = scalar_lea.vmem %s2, 8
  %v111 = vld [vmem:[%s110] sm:$0xf]
  %v112 = vld [vmem:[%s110 + $0x4] sm:$0xf]
  %v130 = vunpack.c.l.b16 %v91
  %v131 = vunpack.c.l.b16 %v92
  %v132 = vunpack.c.l.b16 %v93
  %v133 = vunpack.c.l.b16 %v94
  %v134 = vunpack.c.l.b16 %v95
  %v135 = vunpack.c.l.b16 %v96
  %v136 = vunpack.c.l.b16 %v97
  %v137 = vunpack.c.l.b16 %v98
  %v138 = vunpack.c.l.b16 %v99
  %v139 = vunpack.c.l.b16 %v100
  %v140 = vunpack.c.l.b16 %v101
  %v141 = vunpack.c.l.b16 %v102
  %v142 = vunpack.c.l.b16 %v103
  %v143 = vunpack.c.l.b16 %v104
  %v144 = vunpack.c.l.b16 %v105
  %v145 = vunpack.c.l.b16 %v106
  %v146 = vunpack.c.l.b16 %v109
  %v147 = vpack.c.b16 %v131, %v130
  %v148 = vpack.c.b16 %v133, %v132
  %v149 = vpack.c.b16 %v135, %v134
  %v150 = vpack.c.b16 %v137, %v136
  %v151 = vpack.c.b16 %v139, %v138
  %v152 = vpack.c.b16 %v141, %v140
  %v153 = vpack.c.b16 %v143, %v142
  %v154 = vpack.c.b16 %v145, %v144
  %v155 = vpack.c.b16 %v146, %v146
  %vm156 = vsmask.f32 7424
  %v158 = vshrl.u32 %v147, 16
  %v160 = vshll.u32 %v147, 16
  %v162 = vrot.slane %v160, 1
  %v163 = vor.u32 %v158, %v162
  %v165 = vshll.u32 %v148, 16
  %v167 = vrot.slane %v165, 1
  %v168 = vsel %vm156, %v163, %v167
  %v169 = vshrl.u32 %v148, 16
  %v171 = vor.u32 %v169, %v167
  %v173 = vshll.u32 %v149, 16
  %v175 = vrot.slane %v173, 1
  %v176 = vsel %vm156, %v171, %v175
  %v177 = vshrl.u32 %v149, 16
  %v179 = vor.u32 %v177, %v175
  %v181 = vshll.u32 %v150, 16
  %v183 = vrot.slane %v181, 1
  %v184 = vsel %vm156, %v179, %v183
  %v185 = vshrl.u32 %v150, 16
  %v187 = vor.u32 %v185, %v183
  %v189 = vshll.u32 %v151, 16
  %v191 = vrot.slane %v189, 1
  %v192 = vsel %vm156, %v187, %v191
  %v193 = vshrl.u32 %v151, 16
  %v195 = vor.u32 %v193, %v191
  %v197 = vshll.u32 %v152, 16
  %v199 = vrot.slane %v197, 1
  %v200 = vsel %vm156, %v195, %v199
  %v201 = vshrl.u32 %v152, 16
  %v203 = vor.u32 %v201, %v199
  %v205 = vshll.u32 %v153, 16
  %v207 = vrot.slane %v205, 1
  %v208 = vsel %vm156, %v203, %v207
  %v209 = vshrl.u32 %v153, 16
  %v211 = vor.u32 %v209, %v207
  %v213 = vshll.u32 %v154, 16
  %v215 = vrot.slane %v213, 1
  %v216 = vsel %vm156, %v211, %v215
  %v217 = vshrl.u32 %v154, 16
  %v219 = vor.u32 %v217, %v215
  %v221 = vshll.u32 %v155, 16
  %v223 = vrot.slane %v221, 1
  %v224 = vsel %vm156, %v219, %v223
  %v227 = vunpack.c.l.b16 %v111
  %v228 = vunpack.c.l.b16 %v112
  %v229 = vpack.c.b16 %v228, %v227
  %vm231 = vcmask 130048
  %v233 = vsel %vm231, %v168, 0
  %v236 = vsel %vm231, %v176, 0
  %v239 = vsel %vm231, %v184, 0
  %v242 = vsel %vm231, %v192, 0
  %v245 = vsel %vm231, %v200, 0
  %v248 = vsel %vm231, %v208, 0
  %v251 = vsel %vm231, %v216, 0
  %v254 = vsel %vm231, %v224, 0
  %256 = vmatpush.bf16.msra.mxu0 0
  %257 = vmatpush.bf16.msra.mxu0 0
  %258 = vmatpush.bf16.msra.mxu0 0
  %259 = vmatpush.bf16.msra.mxu0 0
  %260 = vmatpush.bf16.msra.mxu0 0
  %261 = vmatpush.bf16.msra.mxu0 0
  %262 = vmatpush.bf16.msra.mxu0 0
  %263 = vmatpush.bf16.msra.mxu0 %v229
  %264 = vmatmul.bf16.gmra.mxu0 %v233
  %v265 = vpop.f32.mrf.mxu0
  %v266 = vadd.f32 0.0, %v265
  %v267 = vpop.f32.mrf.mxu0
  %v268 = vadd.f32 0.0, %v267
  %269 = vmatmul.bf16.gmra.mxu0 %v236
  %v270 = vpop.f32.mrf.mxu0
  %v271 = vadd.f32 0.0, %v270
  %v272 = vpop.f32.mrf.mxu0
  %v273 = vadd.f32 0.0, %v272
  %274 = vmatmul.bf16.gmra.mxu0 %v239
  %v275 = vpop.f32.mrf.mxu0
  %v276 = vadd.f32 0.0, %v275
  %v277 = vpop.f32.mrf.mxu0
  %v278 = vadd.f32 0.0, %v277
  %279 = vmatmul.bf16.gmra.mxu0 %v242
  %v280 = vpop.f32.mrf.mxu0
  %v281 = vadd.f32 0.0, %v280
  %v282 = vpop.f32.mrf.mxu0
  %v283 = vadd.f32 0.0, %v282
  %284 = vmatmul.bf16.gmra.mxu0 %v245
  %v285 = vpop.f32.mrf.mxu0
  %v286 = vadd.f32 0.0, %v285
  %v287 = vpop.f32.mrf.mxu0
  %v288 = vadd.f32 0.0, %v287
  %289 = vmatmul.bf16.gmra.mxu0 %v248
  %v290 = vpop.f32.mrf.mxu0
  %v291 = vadd.f32 0.0, %v290
  %v292 = vpop.f32.mrf.mxu0
  %v293 = vadd.f32 0.0, %v292
  %294 = vmatmul.bf16.gmra.mxu0 %v251
  %v295 = vpop.f32.mrf.mxu0
  %v296 = vadd.f32 0.0, %v295
  %v297 = vpop.f32.mrf.mxu0
  %v298 = vadd.f32 0.0, %v297
  %299 = vmatmul.bf16.gmra.mxu0 %v254
  %v300 = vpop.f32.mrf.mxu0
  %v301 = vadd.f32 0.0, %v300
  %v302 = vpop.f32.mrf.mxu0
  %v303 = vadd.f32 0.0, %v302
  %304 = vdwg.mxu0
  %v307 = vunpack.c.l.b16 %v107
  %v308 = vunpack.c.l.b16 %v108
  %v309 = vpack.c.b16 %v308, %v307
  %v311 = vsel %vm231, %v147, 0
  %v313 = vsel %vm231, %v148, 0
  %v315 = vsel %vm231, %v149, 0
  %v317 = vsel %vm231, %v150, 0
  %v319 = vsel %vm231, %v151, 0
  %v321 = vsel %vm231, %v152, 0
  %v323 = vsel %vm231, %v153, 0
  %v325 = vsel %vm231, %v154, 0
  %327 = vmatpush.bf16.msra.mxu0 0
  %328 = vmatpush.bf16.msra.mxu0 0
  %329 = vmatpush.bf16.msra.mxu0 0
  %330 = vmatpush.bf16.msra.mxu0 0
  %331 = vmatpush.bf16.msra.mxu0 0
  %332 = vmatpush.bf16.msra.mxu0 0
  %333 = vmatpush.bf16.msra.mxu0 0
  %334 = vmatpush.bf16.msra.mxu0 %v309
  %335 = vmatmul.bf16.gmra.mxu0 %v311
  %v336 = vpop.f32.mrf.mxu0
  %v337 = vadd.f32 %v266, %v336
  %v338 = vpop.f32.mrf.mxu0
  %v339 = vadd.f32 %v268, %v338
  %340 = vmatmul.bf16.gmra.mxu0 %v313
  %v341 = vpop.f32.mrf.mxu0
  %v342 = vadd.f32 %v271, %v341
  %v343 = vpop.f32.mrf.mxu0
  %v344 = vadd.f32 %v273, %v343
  %345 = vmatmul.bf16.gmra.mxu0 %v315
  %v346 = vpop.f32.mrf.mxu0
  %v347 = vadd.f32 %v276, %v346
  %v348 = vpop.f32.mrf.mxu0
  %v349 = vadd.f32 %v278, %v348
  %350 = vmatmul.bf16.gmra.mxu0 %v317
  %v351 = vpop.f32.mrf.mxu0
  %v352 = vadd.f32 %v281, %v351
  %v353 = vpop.f32.mrf.mxu0
  %v354 = vadd.f32 %v283, %v353
  %355 = vmatmul.bf16.gmra.mxu0 %v319
  %v356 = vpop.f32.mrf.mxu0
  %v357 = vadd.f32 %v286, %v356
  %v358 = vpop.f32.mrf.mxu0
  %v359 = vadd.f32 %v288, %v358
  %360 = vmatmul.bf16.gmra.mxu0 %v321
  %v361 = vpop.f32.mrf.mxu0
  %v362 = vadd.f32 %v291, %v361
  %v363 = vpop.f32.mrf.mxu0
  %v364 = vadd.f32 %v293, %v363
  %365 = vmatmul.bf16.gmra.mxu0 %v323
  %v366 = vpop.f32.mrf.mxu0
  %v367 = vadd.f32 %v296, %v366
  %v368 = vpop.f32.mrf.mxu0
  %v369 = vadd.f32 %v298, %v368
  %370 = vmatmul.bf16.gmra.mxu0 %v325
  %v371 = vpop.f32.mrf.mxu0
  %v372 = vadd.f32 %v301, %v371
  %v373 = vpop.f32.mrf.mxu0
  %v374 = vadd.f32 %v303, %v373
  %375 = vdwg.mxu0
  %v376 = vld [vmem:[#allocation2] sm:$0xe]
  %s377 = scalar_lea.vmem %s2, 16
  %v378 = vld [vmem:[%s377] sm:$0xf]
  %v379 = vld [vmem:[%s377 + $0x4] sm:$0xf]
  %v381 = vunpack.c.l.b16 %v376
  %v382 = vpack.c.b16 %v131, %v381
  %vm383 = vcmask 1046528
  %v384 = vrot.slane %v382, 1
  %v385 = vrot.slane %v148, 1
  %v386 = vsel %vm383, %v384, %v385
  %v387 = vrot.slane %v149, 1
  %v388 = vsel %vm383, %v385, %v387
  %v389 = vrot.slane %v150, 1
  %v390 = vsel %vm383, %v387, %v389
  %v391 = vrot.slane %v151, 1
  %v392 = vsel %vm383, %v389, %v391
  %v393 = vrot.slane %v152, 1
  %v394 = vsel %vm383, %v391, %v393
  %v395 = vrot.slane %v153, 1
  %v396 = vsel %vm383, %v393, %v395
  %v397 = vrot.slane %v154, 1
  %v398 = vsel %vm383, %v395, %v397
  %v399 = vrot.slane %v155, 1
  %v400 = vsel %vm383, %v397, %v399
  %v403 = vunpack.c.l.b16 %v378
  %v404 = vunpack.c.l.b16 %v379
  %v405 = vpack.c.b16 %v404, %v403
  %v408 = vsel %vm231, %v386, 0
  %v411 = vsel %vm231, %v388, 0
  %v414 = vsel %vm231, %v390, 0
  %v417 = vsel %vm231, %v392, 0
  %v420 = vsel %vm231, %v394, 0
  %v423 = vsel %vm231, %v396, 0
  %v426 = vsel %vm231, %v398, 0
  %v429 = vsel %vm231, %v400, 0
  %431 = vmatpush.bf16.msra.mxu0 0
  %432 = vmatpush.bf16.msra.mxu0 0
  %433 = vmatpush.bf16.msra.mxu0 0
  %434 = vmatpush.bf16.msra.mxu0 0
  %435 = vmatpush.bf16.msra.mxu0 0
  %436 = vmatpush.bf16.msra.mxu0 0
  %437 = vmatpush.bf16.msra.mxu0 0
  %438 = vmatpush.bf16.msra.mxu0 %v405
  %439 = vmatmul.bf16.gmra.mxu0 %v408
  %v440 = vpop.f32.mrf.mxu0
  %v441 = vadd.f32 0.0, %v440
  %v442 = vpop.f32.mrf.mxu0
  %v443 = vadd.f32 0.0, %v442
  %444 = vmatmul.bf16.gmra.mxu0 %v411
  %v445 = vpop.f32.mrf.mxu0
  %v446 = vadd.f32 0.0, %v445
  %v447 = vpop.f32.mrf.mxu0
  %v448 = vadd.f32 0.0, %v447
  %449 = vmatmul.bf16.gmra.mxu0 %v414
  %v450 = vpop.f32.mrf.mxu0
  %v451 = vadd.f32 0.0, %v450
  %v452 = vpop.f32.mrf.mxu0
  %v453 = vadd.f32 0.0, %v452
  %454 = vmatmul.bf16.gmra.mxu0 %v417
  %v455 = vpop.f32.mrf.mxu0
  %v456 = vadd.f32 0.0, %v455
  %v457 = vpop.f32.mrf.mxu0
  %v458 = vadd.f32 0.0, %v457
  %459 = vmatmul.bf16.gmra.mxu0 %v420
  %v460 = vpop.f32.mrf.mxu0
  %v461 = vadd.f32 0.0, %v460
  %v462 = vpop.f32.mrf.mxu0
  %v463 = vadd.f32 0.0, %v462
  %464 = vmatmul.bf16.gmra.mxu0 %v423
  %v465 = vpop.f32.mrf.mxu0
  %v466 = vadd.f32 0.0, %v465
  %v467 = vpop.f32.mrf.mxu0
  %v468 = vadd.f32 0.0, %v467
  %469 = vmatmul.bf16.gmra.mxu0 %v426
  %v470 = vpop.f32.mrf.mxu0
  %v471 = vadd.f32 0.0, %v470
  %v472 = vpop.f32.mrf.mxu0
  %v473 = vadd.f32 0.0, %v472
  %474 = vmatmul.bf16.gmra.mxu0 %v429
  %v475 = vpop.f32.mrf.mxu0
  %v476 = vadd.f32 0.0, %v475
  %v477 = vpop.f32.mrf.mxu0
  %v478 = vadd.f32 0.0, %v477
  %479 = vdwg.mxu0
  %v480 = vadd.f32 %v337, %v441
  %v481 = vadd.f32 %v339, %v443
  %v482 = vadd.f32 %v342, %v446
  %v483 = vadd.f32 %v344, %v448
  %v484 = vadd.f32 %v347, %v451
  %v485 = vadd.f32 %v349, %v453
  %v486 = vadd.f32 %v352, %v456
  %v487 = vadd.f32 %v354, %v458
  %v488 = vadd.f32 %v357, %v461
  %v489 = vadd.f32 %v359, %v463
  %v490 = vadd.f32 %v362, %v466
  %v491 = vadd.f32 %v364, %v468
  %v492 = vadd.f32 %v367, %v471
  %v493 = vadd.f32 %v369, %v473
  %v494 = vadd.f32 %v372, %v476
  %v495 = vadd.f32 %v374, %v478
  %v496 = vld [vmem:[#allocation2 + $0x8] sm:$0xf]
  %v497 = vld [vmem:[#allocation2 + $0xc] sm:$0xf]
  %v498 = vld [vmem:[#allocation2 + $0x10] sm:$0xf]
  %v499 = vld [vmem:[#allocation2 + $0x14] sm:$0xf]
  %v500 = vld [vmem:[#allocation2 + $0x18] sm:$0xf]
  %v501 = vld [vmem:[#allocation2 + $0x1c] sm:$0xf]
  %v502 = vld [vmem:[#allocation2 + $0x20] sm:$0xf]
  %v503 = vld [vmem:[#allocation2 + $0x24] sm:$0xf]
  %v504 = vld [vmem:[#allocation2 + $0x28] sm:$0xf]
  %v505 = vld [vmem:[#allocation2 + $0x2c] sm:$0xf]
  %v506 = vld [vmem:[#allocation2 + $0x30] sm:$0xf]
  %v507 = vld [vmem:[#allocation2 + $0x34] sm:$0xf]
  %v508 = vld [vmem:[#allocation2 + $0x38] sm:$0xf]
  %v509 = vld [vmem:[#allocation2 + $0x3c] sm:$0xf]
  %v510 = vld [vmem:[#allocation2 + $0x40] sm:$0xf]
  %v511 = vld [vmem:[#allocation2 + $0x44] sm:$0xf]
  %s512 = scalar_lea.vmem %s2, 24
  %v513 = vld [vmem:[%s512] sm:$0xf]
  %v514 = vld [vmem:[%s512 + $0x4] sm:$0xf]
  %v531 = vunpack.c.l.b16 %v496
  %v532 = vunpack.c.l.b16 %v497
  %v533 = vunpack.c.l.b16 %v498
  %v534 = vunpack.c.l.b16 %v499
  %v535 = vunpack.c.l.b16 %v500
  %v536 = vunpack.c.l.b16 %v501
  %v537 = vunpack.c.l.b16 %v502
  %v538 = vunpack.c.l.b16 %v503
  %v539 = vunpack.c.l.b16 %v504
  %v540 = vunpack.c.l.b16 %v505
  %v541 = vunpack.c.l.b16 %v506
  %v542 = vunpack.c.l.b16 %v507
  %v543 = vunpack.c.l.b16 %v508
  %v544 = vunpack.c.l.b16 %v509
  %v545 = vunpack.c.l.b16 %v510
  %v546 = vunpack.c.l.b16 %v511
  %v547 = vpack.c.b16 %v532, %v531
  %v548 = vpack.c.b16 %v534, %v533
  %v549 = vpack.c.b16 %v536, %v535
  %v550 = vpack.c.b16 %v538, %v537
  %v551 = vpack.c.b16 %v540, %v539
  %v552 = vpack.c.b16 %v542, %v541
  %v553 = vpack.c.b16 %v544, %v543
  %v554 = vpack.c.b16 %v546, %v545
  %v557 = vunpack.c.l.b16 %v513
  %v558 = vunpack.c.l.b16 %v514
  %v559 = vpack.c.b16 %v558, %v557
  %v562 = vsel %vm231, %v547, 0
  %v565 = vsel %vm231, %v548, 0
  %v568 = vsel %vm231, %v549, 0
  %v571 = vsel %vm231, %v550, 0
  %v574 = vsel %vm231, %v551, 0
  %v577 = vsel %vm231, %v552, 0
  %v580 = vsel %vm231, %v553, 0
  %v583 = vsel %vm231, %v554, 0
  %585 = vmatpush.bf16.msra.mxu0 0
  %586 = vmatpush.bf16.msra.mxu0 0
  %587 = vmatpush.bf16.msra.mxu0 0
  %588 = vmatpush.bf16.msra.mxu0 0
  %589 = vmatpush.bf16.msra.mxu0 0
  %590 = vmatpush.bf16.msra.mxu0 0
  %591 = vmatpush.bf16.msra.mxu0 0
  %592 = vmatpush.bf16.msra.mxu0 %v559
  %593 = vmatmul.bf16.gmra.mxu0 %v562
  %v594 = vpop.f32.mrf.mxu0
  %v595 = vadd.f32 0.0, %v594
  %v596 = vpop.f32.mrf.mxu0
  %v597 = vadd.f32 0.0, %v596
  %598 = vmatmul.bf16.gmra.mxu0 %v565
  %v599 = vpop.f32.mrf.mxu0
  %v600 = vadd.f32 0.0, %v599
  %v601 = vpop.f32.mrf.mxu0
  %v602 = vadd.f32 0.0, %v601
  %603 = vmatmul.bf16.gmra.mxu0 %v568
  %v604 = vpop.f32.mrf.mxu0
  %v605 = vadd.f32 0.0, %v604
  %v606 = vpop.f32.mrf.mxu0
  %v607 = vadd.f32 0.0, %v606
  %608 = vmatmul.bf16.gmra.mxu0 %v571
  %v609 = vpop.f32.mrf.mxu0
  %v610 = vadd.f32 0.0, %v609
  %v611 = vpop.f32.mrf.mxu0
  %v612 = vadd.f32 0.0, %v611
  %613 = vmatmul.bf16.gmra.mxu0 %v574
  %v614 = vpop.f32.mrf.mxu0
  %v615 = vadd.f32 0.0, %v614
  %v616 = vpop.f32.mrf.mxu0
  %v617 = vadd.f32 0.0, %v616
  %618 = vmatmul.bf16.gmra.mxu0 %v577
  %v619 = vpop.f32.mrf.mxu0
  %v620 = vadd.f32 0.0, %v619
  %v621 = vpop.f32.mrf.mxu0
  %v622 = vadd.f32 0.0, %v621
  %623 = vmatmul.bf16.gmra.mxu0 %v580
  %v624 = vpop.f32.mrf.mxu0
  %v625 = vadd.f32 0.0, %v624
  %v626 = vpop.f32.mrf.mxu0
  %v627 = vadd.f32 0.0, %v626
  %628 = vmatmul.bf16.gmra.mxu0 %v583
  %v629 = vpop.f32.mrf.mxu0
  %v630 = vadd.f32 0.0, %v629
  %v631 = vpop.f32.mrf.mxu0
  %v632 = vadd.f32 0.0, %v631
  %633 = vdwg.mxu0
  %v634 = vadd.f32 %v480, %v595
  %v635 = vadd.f32 %v481, %v597
  %v636 = vadd.f32 %v482, %v600
  %v637 = vadd.f32 %v483, %v602
  %v638 = vadd.f32 %v484, %v605
  %v639 = vadd.f32 %v485, %v607
  %v640 = vadd.f32 %v486, %v610
  %v641 = vadd.f32 %v487, %v612
  %v642 = vadd.f32 %v488, %v615
  %v643 = vadd.f32 %v489, %v617
  %v644 = vadd.f32 %v490, %v620
  %v645 = vadd.f32 %v491, %v622
  %v646 = vadd.f32 %v492, %v625
  %v647 = vadd.f32 %v493, %v627
  %v648 = vadd.f32 %v494, %v630
  %v649 = vadd.f32 %v495, %v632
  %v650 = vld [vmem:[#allocation2 + $0x8] sm:$0xf]
  %v651 = vld [vmem:[#allocation2 + $0xc] sm:$0xf]
  %v652 = vld [vmem:[#allocation2 + $0x10] sm:$0xf]
  %v653 = vld [vmem:[#allocation2 + $0x14] sm:$0xf]
  %v654 = vld [vmem:[#allocation2 + $0x18] sm:$0xf]
  %v655 = vld [vmem:[#allocation2 + $0x1c] sm:$0xf]
  %v656 = vld [vmem:[#allocation2 + $0x20] sm:$0xf]
  %v657 = vld [vmem:[#allocation2 + $0x24] sm:$0xf]
  %v658 = vld [vmem:[#allocation2 + $0x28] sm:$0xf]
  %v659 = vld [vmem:[#allocation2 + $0x2c] sm:$0xf]
  %v660 = vld [vmem:[#allocation2 + $0x30] sm:$0xf]
  %v661 = vld [vmem:[#allocation2 + $0x34] sm:$0xf]
  %v662 = vld [vmem:[#allocation2 + $0x38] sm:$0xf]
  %v663 = vld [vmem:[#allocation2 + $0x3c] sm:$0xf]
  %v664 = vld [vmem:[#allocation2 + $0x40] sm:$0xf]
  %v665 = vld [vmem:[#allocation2 + $0x44] sm:$0xf]
  %v666 = vld [vmem:[#allocation2 + $0x48] sm:$0x1]
  %s667 = scalar_lea.vmem %s2, 32
  %v668 = vld [vmem:[%s667] sm:$0xf]
  %v669 = vld [vmem:[%s667 + $0x4] sm:$0xf]
  %v687 = vunpack.c.l.b16 %v650
  %v688 = vunpack.c.l.b16 %v651
  %v689 = vunpack.c.l.b16 %v652
  %v690 = vunpack.c.l.b16 %v653
  %v691 = vunpack.c.l.b16 %v654
  %v692 = vunpack.c.l.b16 %v655
  %v693 = vunpack.c.l.b16 %v656
  %v694 = vunpack.c.l.b16 %v657
  %v695 = vunpack.c.l.b16 %v658
  %v696 = vunpack.c.l.b16 %v659
  %v697 = vunpack.c.l.b16 %v660
  %v698 = vunpack.c.l.b16 %v661
  %v699 = vunpack.c.l.b16 %v662
  %v700 = vunpack.c.l.b16 %v663
  %v701 = vunpack.c.l.b16 %v664
  %v702 = vunpack.c.l.b16 %v665
  %v703 = vunpack.c.l.b16 %v666
  %v704 = vpack.c.b16 %v688, %v687
  %v705 = vpack.c.b16 %v690, %v689
  %v706 = vpack.c.b16 %v692, %v691
  %v707 = vpack.c.b16 %v694, %v693
  %v708 = vpack.c.b16 %v696, %v695
  %v709 = vpack.c.b16 %v698, %v697
  %v710 = vpack.c.b16 %v700, %v699
  %v711 = vpack.c.b16 %v702, %v701
  %v712 = vpack.c.b16 %v703, %v703
  %v714 = vshrl.u32 %v704, 16
  %v716 = vshll.u32 %v704, 16
  %v718 = vrot.slane %v716, 1
  %v719 = vor.u32 %v714, %v718
  %v721 = vshll.u32 %v705, 16
  %v723 = vrot.slane %v721, 1
  %v724 = vsel %vm156, %v719, %v723
  %v725 = vshrl.u32 %v705, 16
  %v727 = vor.u32 %v725, %v723
  %v729 = vshll.u32 %v706, 16
  %v731 = vrot.slane %v729, 1
  %v732 = vsel %vm156, %v727, %v731
  %v733 = vshrl.u32 %v706, 16
  %v735 = vor.u32 %v733, %v731
  %v737 = vshll.u32 %v707, 16
  %v739 = vrot.slane %v737, 1
  %v740 = vsel %vm156, %v735, %v739
  %v741 = vshrl.u32 %v707, 16
  %v743 = vor.u32 %v741, %v739
  %v745 = vshll.u32 %v708, 16
  %v747 = vrot.slane %v745, 1
  %v748 = vsel %vm156, %v743, %v747
  %v749 = vshrl.u32 %v708, 16
  %v751 = vor.u32 %v749, %v747
  %v753 = vshll.u32 %v709, 16
  %v755 = vrot.slane %v753, 1
  %v756 = vsel %vm156, %v751, %v755
  %v757 = vshrl.u32 %v709, 16
  %v759 = vor.u32 %v757, %v755
  %v761 = vshll.u32 %v710, 16
  %v763 = vrot.slane %v761, 1
  %v764 = vsel %vm156, %v759, %v763
  %v765 = vshrl.u32 %v710, 16
  %v767 = vor.u32 %v765, %v763
  %v769 = vshll.u32 %v711, 16
  %v771 = vrot.slane %v769, 1
  %v772 = vsel %vm156, %v767, %v771
  %v773 = vshrl.u32 %v711, 16
  %v775 = vor.u32 %v773, %v771
  %v777 = vshll.u32 %v712, 16
  %v779 = vrot.slane %v777, 1
  %v780 = vsel %vm156, %v775, %v779
  %v783 = vunpack.c.l.b16 %v668
  %v784 = vunpack.c.l.b16 %v669
  %v785 = vpack.c.b16 %v784, %v783
  %v788 = vsel %vm231, %v724, 0
  %v791 = vsel %vm231, %v732, 0
  %v794 = vsel %vm231, %v740, 0
  %v797 = vsel %vm231, %v748, 0
  %v800 = vsel %vm231, %v756, 0
  %v803 = vsel %vm231, %v764, 0
  %v806 = vsel %vm231, %v772, 0
  %v809 = vsel %vm231, %v780, 0
  %811 = vmatpush.bf16.msra.mxu0 0
  %812 = vmatpush.bf16.msra.mxu0 0
  %813 = vmatpush.bf16.msra.mxu0 0
  %814 = vmatpush.bf16.msra.mxu0 0
  %815 = vmatpush.bf16.msra.mxu0 0
  %816 = vmatpush.bf16.msra.mxu0 0
  %817 = vmatpush.bf16.msra.mxu0 0
  %818 = vmatpush.bf16.msra.mxu0 %v785
  %819 = vmatmul.bf16.gmra.mxu0 %v788
  %v820 = vpop.f32.mrf.mxu0
  %v821 = vadd.f32 0.0, %v820
  %v822 = vpop.f32.mrf.mxu0
  %v823 = vadd.f32 0.0, %v822
  %824 = vmatmul.bf16.gmra.mxu0 %v791
  %v825 = vpop.f32.mrf.mxu0
  %v826 = vadd.f32 0.0, %v825
  %v827 = vpop.f32.mrf.mxu0
  %v828 = vadd.f32 0.0, %v827
  %829 = vmatmul.bf16.gmra.mxu0 %v794
  %v830 = vpop.f32.mrf.mxu0
  %v831 = vadd.f32 0.0, %v830
  %v832 = vpop.f32.mrf.mxu0
  %v833 = vadd.f32 0.0, %v832
  %834 = vmatmul.bf16.gmra.mxu0 %v797
  %v835 = vpop.f32.mrf.mxu0
  %v836 = vadd.f32 0.0, %v835
  %v837 = vpop.f32.mrf.mxu0
  %v838 = vadd.f32 0.0, %v837
  %839 = vmatmul.bf16.gmra.mxu0 %v800
  %v840 = vpop.f32.mrf.mxu0
  %v841 = vadd.f32 0.0, %v840
  %v842 = vpop.f32.mrf.mxu0
  %v843 = vadd.f32 0.0, %v842
  %844 = vmatmul.bf16.gmra.mxu0 %v803
  %v845 = vpop.f32.mrf.mxu0
  %v846 = vadd.f32 0.0, %v845
  %v847 = vpop.f32.mrf.mxu0
  %v848 = vadd.f32 0.0, %v847
  %849 = vmatmul.bf16.gmra.mxu0 %v806
  %v850 = vpop.f32.mrf.mxu0
  %v851 = vadd.f32 0.0, %v850
  %v852 = vpop.f32.mrf.mxu0
  %v853 = vadd.f32 0.0, %v852
  %854 = vmatmul.bf16.gmra.mxu0 %v809
  %v855 = vpop.f32.mrf.mxu0
  %v856 = vadd.f32 0.0, %v855
  %v857 = vpop.f32.mrf.mxu0
  %v858 = vadd.f32 0.0, %v857
  %859 = vdwg.mxu0
  %v860 = vadd.f32 %v634, %v821
  %v861 = vadd.f32 %v635, %v823
  %v862 = vadd.f32 %v636, %v826
  %v863 = vadd.f32 %v637, %v828
  %v864 = vadd.f32 %v638, %v831
  %v865 = vadd.f32 %v639, %v833
  %v866 = vadd.f32 %v640, %v836
  %v867 = vadd.f32 %v641, %v838
  %v868 = vadd.f32 %v642, %v841
  %v869 = vadd.f32 %v643, %v843
  %v870 = vadd.f32 %v644, %v846
  %v871 = vadd.f32 %v645, %v848
  %v872 = vadd.f32 %v646, %v851
  %v873 = vadd.f32 %v647, %v853
  %v874 = vadd.f32 %v648, %v856
  %v875 = vadd.f32 %v649, %v858
  %v876 = vld [vmem:[#allocation2 + $0x8] sm:$0xe]
  %s877 = scalar_lea.vmem %s2, 40
  %v878 = vld [vmem:[%s877] sm:$0xf]
  %v879 = vld [vmem:[%s877 + $0x4] sm:$0xf]
  %v881 = vunpack.c.l.b16 %v876
  %v882 = vpack.c.b16 %v688, %v881
  %v883 = vrot.slane %v882, 1
  %v884 = vrot.slane %v705, 1
  %v885 = vsel %vm383, %v883, %v884
  %v886 = vrot.slane %v706, 1
  %v887 = vsel %vm383, %v884, %v886
  %v888 = vrot.slane %v707, 1
  %v889 = vsel %vm383, %v886, %v888
  %v890 = vrot.slane %v708, 1
  %v891 = vsel %vm383, %v888, %v890
  %v892 = vrot.slane %v709, 1
  %v893 = vsel %vm383, %v890, %v892
  %v894 = vrot.slane %v710, 1
  %v895 = vsel %vm383, %v892, %v894
  %v896 = vrot.slane %v711, 1
  %v897 = vsel %vm383, %v894, %v896
  %v898 = vrot.slane %v712, 1
  %v899 = vsel %vm383, %v896, %v898
  %v902 = vunpack.c.l.b16 %v878
  %v903 = vunpack.c.l.b16 %v879
  %v904 = vpack.c.b16 %v903, %v902
  %v907 = vsel %vm231, %v885, 0
  %v910 = vsel %vm231, %v887, 0
  %v913 = vsel %vm231, %v889, 0
  %v916 = vsel %vm231, %v891, 0
  %v919 = vsel %vm231, %v893, 0
  %v922 = vsel %vm231, %v895, 0
  %v925 = vsel %vm231, %v897, 0
  %v928 = vsel %vm231, %v899, 0
  %930 = vmatpush.bf16.msra.mxu0 0
  %931 = vmatpush.bf16.msra.mxu0 0
  %932 = vmatpush.bf16.msra.mxu0 0
  %933 = vmatpush.bf16.msra.mxu0 0
  %934 = vmatpush.bf16.msra.mxu0 0
  %935 = vmatpush.bf16.msra.mxu0 0
  %936 = vmatpush.bf16.msra.mxu0 0
  %937 = vmatpush.bf16.msra.mxu0 %v904
  %938 = vmatmul.bf16.gmra.mxu0 %v907
  %v939 = vpop.f32.mrf.mxu0
  %v940 = vadd.f32 0.0, %v939
  %v941 = vpop.f32.mrf.mxu0
  %v942 = vadd.f32 0.0, %v941
  %943 = vmatmul.bf16.gmra.mxu0 %v910
  %v944 = vpop.f32.mrf.mxu0
  %v945 = vadd.f32 0.0, %v944
  %v946 = vpop.f32.mrf.mxu0
  %v947 = vadd.f32 0.0, %v946
  %948 = vmatmul.bf16.gmra.mxu0 %v913
  %v949 = vpop.f32.mrf.mxu0
  %v950 = vadd.f32 0.0, %v949
  %v951 = vpop.f32.mrf.mxu0
  %v952 = vadd.f32 0.0, %v951
  %953 = vmatmul.bf16.gmra.mxu0 %v916
  %v954 = vpop.f32.mrf.mxu0
  %v955 = vadd.f32 0.0, %v954
  %v956 = vpop.f32.mrf.mxu0
  %v957 = vadd.f32 0.0, %v956
  %958 = vmatmul.bf16.gmra.mxu0 %v919
  %v959 = vpop.f32.mrf.mxu0
  %v960 = vadd.f32 0.0, %v959
  %v961 = vpop.f32.mrf.mxu0
  %v962 = vadd.f32 0.0, %v961
  %963 = vmatmul.bf16.gmra.mxu0 %v922
  %v964 = vpop.f32.mrf.mxu0
  %v965 = vadd.f32 0.0, %v964
  %v966 = vpop.f32.mrf.mxu0
  %v967 = vadd.f32 0.0, %v966
  %968 = vmatmul.bf16.gmra.mxu0 %v925
  %v969 = vpop.f32.mrf.mxu0
  %v970 = vadd.f32 0.0, %v969
  %v971 = vpop.f32.mrf.mxu0
  %v972 = vadd.f32 0.0, %v971
  %973 = vmatmul.bf16.gmra.mxu0 %v928
  %v974 = vpop.f32.mrf.mxu0
  %v975 = vadd.f32 0.0, %v974
  %v976 = vpop.f32.mrf.mxu0
  %v977 = vadd.f32 0.0, %v976
  %978 = vdwg.mxu0
  %v979 = vadd.f32 %v860, %v940
  %v980 = vadd.f32 %v861, %v942
  %v981 = vadd.f32 %v862, %v945
  %v982 = vadd.f32 %v863, %v947
  %v983 = vadd.f32 %v864, %v950
  %v984 = vadd.f32 %v865, %v952
  %v985 = vadd.f32 %v866, %v955
  %v986 = vadd.f32 %v867, %v957
  %v987 = vadd.f32 %v868, %v960
  %v988 = vadd.f32 %v869, %v962
  %v989 = vadd.f32 %v870, %v965
  %v990 = vadd.f32 %v871, %v967
  %v991 = vadd.f32 %v872, %v970
  %v992 = vadd.f32 %v873, %v972
  %v993 = vadd.f32 %v874, %v975
  %v994 = vadd.f32 %v875, %v977
  %v995 = vld [vmem:[#allocation2 + $0x10] sm:$0xf]
  %v996 = vld [vmem:[#allocation2 + $0x14] sm:$0xf]
  %v997 = vld [vmem:[#allocation2 + $0x18] sm:$0xf]
  %v998 = vld [vmem:[#allocation2 + $0x1c] sm:$0xf]
  %v999 = vld [vmem:[#allocation2 + $0x20] sm:$0xf]
  %v1000 = vld [vmem:[#allocation2 + $0x24] sm:$0xf]
  %v1001 = vld [vmem:[#allocation2 + $0x28] sm:$0xf]
  %v1002 = vld [vmem:[#allocation2 + $0x2c] sm:$0xf]
  %v1003 = vld [vmem:[#allocation2 + $0x30] sm:$0xf]
  %v1004 = vld [vmem:[#allocation2 + $0x34] sm:$0xf]
  %v1005 = vld [vmem:[#allocation2 + $0x38] sm:$0xf]
  %v1006 = vld [vmem:[#allocation2 + $0x3c] sm:$0xf]
  %v1007 = vld [vmem:[#allocation2 + $0x40] sm:$0xf]
  %v1008 = vld [vmem:[#allocation2 + $0x44] sm:$0xf]
  %v1009 = vld [vmem:[#allocation2 + $0x48] sm:$0xf]
  %v1010 = vld [vmem:[#allocation2 + $0x4c] sm:$0xf]
  %s1011 = scalar_lea.vmem %s2, 48
  %v1012 = vld [vmem:[%s1011] sm:$0xf]
  %v1013 = vld [vmem:[%s1011 + $0x4] sm:$0xf]
  %v1030 = vunpack.c.l.b16 %v995
  %v1031 = vunpack.c.l.b16 %v996
  %v1032 = vunpack.c.l.b16 %v997
  %v1033 = vunpack.c.l.b16 %v998
  %v1034 = vunpack.c.l.b16 %v999
  %v1035 = vunpack.c.l.b16 %v1000
  %v1036 = vunpack.c.l.b16 %v1001
  %v1037 = vunpack.c.l.b16 %v1002
  %v1038 = vunpack.c.l.b16 %v1003
  %v1039 = vunpack.c.l.b16 %v1004
  %v1040 = vunpack.c.l.b16 %v1005
  %v1041 = vunpack.c.l.b16 %v1006
  %v1042 = vunpack.c.l.b16 %v1007
  %v1043 = vunpack.c.l.b16 %v1008
  %v1044 = vunpack.c.l.b16 %v1009
  %v1045 = vunpack.c.l.b16 %v1010
  %v1046 = vpack.c.b16 %v1031, %v1030
  %v1047 = vpack.c.b16 %v1033, %v1032
  %v1048 = vpack.c.b16 %v1035, %v1034
  %v1049 = vpack.c.b16 %v1037, %v1036
  %v1050 = vpack.c.b16 %v1039, %v1038
  %v1051 = vpack.c.b16 %v1041, %v1040
  %v1052 = vpack.c.b16 %v1043, %v1042
  %v1053 = vpack.c.b16 %v1045, %v1044
  %v1056 = vunpack.c.l.b16 %v1012
  %v1057 = vunpack.c.l.b16 %v1013
  %v1058 = vpack.c.b16 %v1057, %v1056
  %v1061 = vsel %vm231, %v1046, 0
  %v1064 = vsel %vm231, %v1047, 0
  %v1067 = vsel %vm231, %v1048, 0
  %v1070 = vsel %vm231, %v1049, 0
  %v1073 = vsel %vm231, %v1050, 0
  %v1076 = vsel %vm231, %v1051, 0
  %v1079 = vsel %vm231, %v1052, 0
  %v1082 = vsel %vm231, %v1053, 0
  %1084 = vmatpush.bf16.msra.mxu0 0
  %1085 = vmatpush.bf16.msra.mxu0 0
  %1086 = vmatpush.bf16.msra.mxu0 0
  %1087 = vmatpush.bf16.msra.mxu0 0
  %1088 = vmatpush.bf16.msra.mxu0 0
  %1089 = vmatpush.bf16.msra.mxu0 0
  %1090 = vmatpush.bf16.msra.mxu0 0
  %1091 = vmatpush.bf16.msra.mxu0 %v1058
  %1092 = vmatmul.bf16.gmra.mxu0 %v1061
  %v1093 = vpop.f32.mrf.mxu0
  %v1094 = vadd.f32 0.0, %v1093
  %v1095 = vpop.f32.mrf.mxu0
  %v1096 = vadd.f32 0.0, %v1095
  %1097 = vmatmul.bf16.gmra.mxu0 %v1064
  %v1098 = vpop.f32.mrf.mxu0
  %v1099 = vadd.f32 0.0, %v1098
  %v1100 = vpop.f32.mrf.mxu0
  %v1101 = vadd.f32 0.0, %v1100
  %1102 = vmatmul.bf16.gmra.mxu0 %v1067
  %v1103 = vpop.f32.mrf.mxu0
  %v1104 = vadd.f32 0.0, %v1103
  %v1105 = vpop.f32.mrf.mxu0
  %v1106 = vadd.f32 0.0, %v1105
  %1107 = vmatmul.bf16.gmra.mxu0 %v1070
  %v1108 = vpop.f32.mrf.mxu0
  %v1109 = vadd.f32 0.0, %v1108
  %v1110 = vpop.f32.mrf.mxu0
  %v1111 = vadd.f32 0.0, %v1110
  %1112 = vmatmul.bf16.gmra.mxu0 %v1073
  %v1113 = vpop.f32.mrf.mxu0
  %v1114 = vadd.f32 0.0, %v1113
  %v1115 = vpop.f32.mrf.mxu0
  %v1116 = vadd.f32 0.0, %v1115
  %1117 = vmatmul.bf16.gmra.mxu0 %v1076
  %v1118 = vpop.f32.mrf.mxu0
  %v1119 = vadd.f32 0.0, %v1118
  %v1120 = vpop.f32.mrf.mxu0
  %v1121 = vadd.f32 0.0, %v1120
  %1122 = vmatmul.bf16.gmra.mxu0 %v1079
  %v1123 = vpop.f32.mrf.mxu0
  %v1124 = vadd.f32 0.0, %v1123
  %v1125 = vpop.f32.mrf.mxu0
  %v1126 = vadd.f32 0.0, %v1125
  %1127 = vmatmul.bf16.gmra.mxu0 %v1082
  %v1128 = vpop.f32.mrf.mxu0
  %v1129 = vadd.f32 0.0, %v1128
  %v1130 = vpop.f32.mrf.mxu0
  %v1131 = vadd.f32 0.0, %v1130
  %1132 = vdwg.mxu0
  %v1133 = vadd.f32 %v979, %v1094
  %v1134 = vadd.f32 %v980, %v1096
  %v1135 = vadd.f32 %v981, %v1099
  %v1136 = vadd.f32 %v982, %v1101
  %v1137 = vadd.f32 %v983, %v1104
  %v1138 = vadd.f32 %v984, %v1106
  %v1139 = vadd.f32 %v985, %v1109
  %v1140 = vadd.f32 %v986, %v1111
  %v1141 = vadd.f32 %v987, %v1114
  %v1142 = vadd.f32 %v988, %v1116
  %v1143 = vadd.f32 %v989, %v1119
  %v1144 = vadd.f32 %v990, %v1121
  %v1145 = vadd.f32 %v991, %v1124
  %v1146 = vadd.f32 %v992, %v1126
  %v1147 = vadd.f32 %v993, %v1129
  %v1148 = vadd.f32 %v994, %v1131
  %v1149 = vld [vmem:[#allocation2 + $0x10] sm:$0xf]
  %v1150 = vld [vmem:[#allocation2 + $0x14] sm:$0xf]
  %v1151 = vld [vmem:[#allocation2 + $0x18] sm:$0xf]
  %v1152 = vld [vmem:[#allocation2 + $0x1c] sm:$0xf]
  %v1153 = vld [vmem:[#allocation2 + $0x20] sm:$0xf]
  %v1154 = vld [vmem:[#allocation2 + $0x24] sm:$0xf]
  %v1155 = vld [vmem:[#allocation2 + $0x28] sm:$0xf]
  %v1156 = vld [vmem:[#allocation2 + $0x2c] sm:$0xf]
  %v1157 = vld [vmem:[#allocation2 + $0x30] sm:$0xf]
  %v1158 = vld [vmem:[#allocation2 + $0x34] sm:$0xf]
  %v1159 = vld [vmem:[#allocation2 + $0x38] sm:$0xf]
  %v1160 = vld [vmem:[#allocation2 + $0x3c] sm:$0xf]
  %v1161 = vld [vmem:[#allocation2 + $0x40] sm:$0xf]
  %v1162 = vld [vmem:[#allocation2 + $0x44] sm:$0xf]
  %v1163 = vld [vmem:[#allocation2 + $0x48] sm:$0xf]
  %v1164 = vld [vmem:[#allocation2 + $0x4c] sm:$0xf]
  %v1165 = vld [vmem:[#allocation2 + $0x50] sm:$0x1]
  %s1166 = scalar_lea.vmem %s2, 56
  %v1167 = vld [vmem:[%s1166] sm:$0xf]
  %v1168 = vld [vmem:[%s1166 + $0x4] sm:$0xf]
  %v1186 = vunpack.c.l.b16 %v1149
  %v1187 = vunpack.c.l.b16 %v1150
  %v1188 = vunpack.c.l.b16 %v1151
  %v1189 = vunpack.c.l.b16 %v1152
  %v1190 = vunpack.c.l.b16 %v1153
  %v1191 = vunpack.c.l.b16 %v1154
  %v1192 = vunpack.c.l.b16 %v1155
  %v1193 = vunpack.c.l.b16 %v1156
  %v1194 = vunpack.c.l.b16 %v1157
  %v1195 = vunpack.c.l.b16 %v1158
  %v1196 = vunpack.c.l.b16 %v1159
  %v1197 = vunpack.c.l.b16 %v1160
  %v1198 = vunpack.c.l.b16 %v1161
  %v1199 = vunpack.c.l.b16 %v1162
  %v1200 = vunpack.c.l.b16 %v1163
  %v1201 = vunpack.c.l.b16 %v1164
  %v1202 = vunpack.c.l.b16 %v1165
  %v1203 = vpack.c.b16 %v1187, %v1186
  %v1204 = vpack.c.b16 %v1189, %v1188
  %v1205 = vpack.c.b16 %v1191, %v1190
  %v1206 = vpack.c.b16 %v1193, %v1192
  %v1207 = vpack.c.b16 %v1195, %v1194
  %v1208 = vpack.c.b16 %v1197, %v1196
  %v1209 = vpack.c.b16 %v1199, %v1198
  %v1210 = vpack.c.b16 %v1201, %v1200
  %v1211 = vpack.c.b16 %v1202, %v1202
  %v1213 = vshrl.u32 %v1203, 16
  %v1215 = vshll.u32 %v1203, 16
  %v1217 = vrot.slane %v1215, 1
  %v1218 = vor.u32 %v1213, %v1217
  %v1220 = vshll.u32 %v1204, 16
  %v1222 = vrot.slane %v1220, 1
  %v1223 = vsel %vm156, %v1218, %v1222
  %v1224 = vshrl.u32 %v1204, 16
  %v1226 = vor.u32 %v1224, %v1222
  %v1228 = vshll.u32 %v1205, 16
  %v1230 = vrot.slane %v1228, 1
  %v1231 = vsel %vm156, %v1226, %v1230
  %v1232 = vshrl.u32 %v1205, 16
  %v1234 = vor.u32 %v1232, %v1230
  %v1236 = vshll.u32 %v1206, 16
  %v1238 = vrot.slane %v1236, 1
  %v1239 = vsel %vm156, %v1234, %v1238
  %v1240 = vshrl.u32 %v1206, 16
  %v1242 = vor.u32 %v1240, %v1238
  %v1244 = vshll.u32 %v1207, 16
  %v1246 = vrot.slane %v1244, 1
  %v1247 = vsel %vm156, %v1242, %v1246
  %v1248 = vshrl.u32 %v1207, 16
  %v1250 = vor.u32 %v1248, %v1246
  %v1252 = vshll.u32 %v1208, 16
  %v1254 = vrot.slane %v1252, 1
  %v1255 = vsel %vm156, %v1250, %v1254
  %v1256 = vshrl.u32 %v1208, 16
  %v1258 = vor.u32 %v1256, %v1254
  %v1260 = vshll.u32 %v1209, 16
  %v1262 = vrot.slane %v1260, 1
  %v1263 = vsel %vm156, %v1258, %v1262
  %v1264 = vshrl.u32 %v1209, 16
  %v1266 = vor.u32 %v1264, %v1262
  %v1268 = vshll.u32 %v1210, 16
  %v1270 = vrot.slane %v1268, 1
  %v1271 = vsel %vm156, %v1266, %v1270
  %v1272 = vshrl.u32 %v1210, 16
  %v1274 = vor.u32 %v1272, %v1270
  %v1276 = vshll.u32 %v1211, 16
  %v1278 = vrot.slane %v1276, 1
  %v1279 = vsel %vm156, %v1274, %v1278
  %v1282 = vunpack.c.l.b16 %v1167
  %v1283 = vunpack.c.l.b16 %v1168
  %v1284 = vpack.c.b16 %v1283, %v1282
  %v1287 = vsel %vm231, %v1223, 0
  %v1290 = vsel %vm231, %v1231, 0
  %v1293 = vsel %vm231, %v1239, 0
  %v1296 = vsel %vm231, %v1247, 0
  %v1299 = vsel %vm231, %v1255, 0
  %v1302 = vsel %vm231, %v1263, 0
  %v1305 = vsel %vm231, %v1271, 0
  %v1308 = vsel %vm231, %v1279, 0
  %1310 = vmatpush.bf16.msra.mxu0 0
  %1311 = vmatpush.bf16.msra.mxu0 0
  %1312 = vmatpush.bf16.msra.mxu0 0
  %1313 = vmatpush.bf16.msra.mxu0 0
  %1314 = vmatpush.bf16.msra.mxu0 0
  %1315 = vmatpush.bf16.msra.mxu0 0
  %1316 = vmatpush.bf16.msra.mxu0 0
  %1317 = vmatpush.bf16.msra.mxu0 %v1284
  %1318 = vmatmul.bf16.gmra.mxu0 %v1287
  %v1319 = vpop.f32.mrf.mxu0
  %v1320 = vadd.f32 0.0, %v1319
  %v1321 = vpop.f32.mrf.mxu0
  %v1322 = vadd.f32 0.0, %v1321
  %1323 = vmatmul.bf16.gmra.mxu0 %v1290
  %v1324 = vpop.f32.mrf.mxu0
  %v1325 = vadd.f32 0.0, %v1324
  %v1326 = vpop.f32.mrf.mxu0
  %v1327 = vadd.f32 0.0, %v1326
  %1328 = vmatmul.bf16.gmra.mxu0 %v1293
  %v1329 = vpop.f32.mrf.mxu0
  %v1330 = vadd.f32 0.0, %v1329
  %v1331 = vpop.f32.mrf.mxu0
  %v1332 = vadd.f32 0.0, %v1331
  %1333 = vmatmul.bf16.gmra.mxu0 %v1296
  %v1334 = vpop.f32.mrf.mxu0
  %v1335 = vadd.f32 0.0, %v1334
  %v1336 = vpop.f32.mrf.mxu0
  %v1337 = vadd.f32 0.0, %v1336
  %1338 = vmatmul.bf16.gmra.mxu0 %v1299
  %v1339 = vpop.f32.mrf.mxu0
  %v1340 = vadd.f32 0.0, %v1339
  %v1341 = vpop.f32.mrf.mxu0
  %v1342 = vadd.f32 0.0, %v1341
  %1343 = vmatmul.bf16.gmra.mxu0 %v1302
  %v1344 = vpop.f32.mrf.mxu0
  %v1345 = vadd.f32 0.0, %v1344
  %v1346 = vpop.f32.mrf.mxu0
  %v1347 = vadd.f32 0.0, %v1346
  %1348 = vmatmul.bf16.gmra.mxu0 %v1305
  %v1349 = vpop.f32.mrf.mxu0
  %v1350 = vadd.f32 0.0, %v1349
  %v1351 = vpop.f32.mrf.mxu0
  %v1352 = vadd.f32 0.0, %v1351
  %1353 = vmatmul.bf16.gmra.mxu0 %v1308
  %v1354 = vpop.f32.mrf.mxu0
  %v1355 = vadd.f32 0.0, %v1354
  %v1356 = vpop.f32.mrf.mxu0
  %v1357 = vadd.f32 0.0, %v1356
  %1358 = vdwg.mxu0
  %v1359 = vadd.f32 %v1133, %v1320
  %v1360 = vadd.f32 %v1134, %v1322
  %v1361 = vadd.f32 %v1135, %v1325
  %v1362 = vadd.f32 %v1136, %v1327
  %v1363 = vadd.f32 %v1137, %v1330
  %v1364 = vadd.f32 %v1138, %v1332
  %v1365 = vadd.f32 %v1139, %v1335
  %v1366 = vadd.f32 %v1140, %v1337
  %v1367 = vadd.f32 %v1141, %v1340
  %v1368 = vadd.f32 %v1142, %v1342
  %v1369 = vadd.f32 %v1143, %v1345
  %v1370 = vadd.f32 %v1144, %v1347
  %v1371 = vadd.f32 %v1145, %v1350
  %v1372 = vadd.f32 %v1146, %v1352
  %v1373 = vadd.f32 %v1147, %v1355
  %v1374 = vadd.f32 %v1148, %v1357
  %v1375 = vld [vmem:[#allocation2 + $0x10] sm:$0xe]
  %s1376 = scalar_lea.vmem %s2, 64
  %v1377 = vld [vmem:[%s1376] sm:$0xf]
  %v1378 = vld [vmem:[%s1376 + $0x4] sm:$0xf]
  %v1380 = vunpack.c.l.b16 %v1375
  %v1381 = vpack.c.b16 %v1187, %v1380
  %v1382 = vrot.slane %v1381, 1
  %v1383 = vrot.slane %v1204, 1
  %v1384 = vsel %vm383, %v1382, %v1383
  %v1385 = vrot.slane %v1205, 1
  %v1386 = vsel %vm383, %v1383, %v1385
  %v1387 = vrot.slane %v1206, 1
  %v1388 = vsel %vm383, %v1385, %v1387
  %v1389 = vrot.slane %v1207, 1
  %v1390 = vsel %vm383, %v1387, %v1389
  %v1391 = vrot.slane %v1208, 1
  %v1392 = vsel %vm383, %v1389, %v1391
  %v1393 = vrot.slane %v1209, 1
  %v1394 = vsel %vm383, %v1391, %v1393
  %v1395 = vrot.slane %v1210, 1
  %v1396 = vsel %vm383, %v1393, %v1395
  %v1397 = vrot.slane %v1211, 1
  %v1398 = vsel %vm383, %v1395, %v1397
  %v1401 = vunpack.c.l.b16 %v1377
  %v1402 = vunpack.c.l.b16 %v1378
  %v1403 = vpack.c.b16 %v1402, %v1401
  %v1406 = vsel %vm231, %v1384, 0
  %v1409 = vsel %vm231, %v1386, 0
  %v1412 = vsel %vm231, %v1388, 0
  %v1415 = vsel %vm231, %v1390, 0
  %v1418 = vsel %vm231, %v1392, 0
  %v1421 = vsel %vm231, %v1394, 0
  %v1424 = vsel %vm231, %v1396, 0
  %v1427 = vsel %vm231, %v1398, 0
  %1429 = vmatpush.bf16.msra.mxu0 0
  %1430 = vmatpush.bf16.msra.mxu0 0
  %1431 = vmatpush.bf16.msra.mxu0 0
  %1432 = vmatpush.bf16.msra.mxu0 0
  %1433 = vmatpush.bf16.msra.mxu0 0
  %1434 = vmatpush.bf16.msra.mxu0 0
  %1435 = vmatpush.bf16.msra.mxu0 0
  %1436 = vmatpush.bf16.msra.mxu0 %v1403
  %1437 = vmatmul.bf16.gmra.mxu0 %v1406
  %v1438 = vpop.f32.mrf.mxu0
  %v1439 = vadd.f32 0.0, %v1438
  %v1440 = vpop.f32.mrf.mxu0
  %v1441 = vadd.f32 0.0, %v1440
  %1442 = vmatmul.bf16.gmra.mxu0 %v1409
  %v1443 = vpop.f32.mrf.mxu0
  %v1444 = vadd.f32 0.0, %v1443
  %v1445 = vpop.f32.mrf.mxu0
  %v1446 = vadd.f32 0.0, %v1445
  %1447 = vmatmul.bf16.gmra.mxu0 %v1412
  %v1448 = vpop.f32.mrf.mxu0
  %v1449 = vadd.f32 0.0, %v1448
  %v1450 = vpop.f32.mrf.mxu0
  %v1451 = vadd.f32 0.0, %v1450
  %1452 = vmatmul.bf16.gmra.mxu0 %v1415
  %v1453 = vpop.f32.mrf.mxu0
  %v1454 = vadd.f32 0.0, %v1453
  %v1455 = vpop.f32.mrf.mxu0
  %v1456 = vadd.f32 0.0, %v1455
  %1457 = vmatmul.bf16.gmra.mxu0 %v1418
  %v1458 = vpop.f32.mrf.mxu0
  %v1459 = vadd.f32 0.0, %v1458
  %v1460 = vpop.f32.mrf.mxu0
  %v1461 = vadd.f32 0.0, %v1460
  %1462 = vmatmul.bf16.gmra.mxu0 %v1421
  %v1463 = vpop.f32.mrf.mxu0
  %v1464 = vadd.f32 0.0, %v1463
  %v1465 = vpop.f32.mrf.mxu0
  %v1466 = vadd.f32 0.0, %v1465
  %1467 = vmatmul.bf16.gmra.mxu0 %v1424
  %v1468 = vpop.f32.mrf.mxu0
  %v1469 = vadd.f32 0.0, %v1468
  %v1470 = vpop.f32.mrf.mxu0
  %v1471 = vadd.f32 0.0, %v1470
  %1472 = vmatmul.bf16.gmra.mxu0 %v1427
  %v1473 = vpop.f32.mrf.mxu0
  %v1474 = vadd.f32 0.0, %v1473
  %v1475 = vpop.f32.mrf.mxu0
  %v1476 = vadd.f32 0.0, %v1475
  %1477 = vdwg.mxu0
  %v1478 = vadd.f32 %v1359, %v1439
  %v1479 = vadd.f32 %v1360, %v1441
  %v1480 = vadd.f32 %v1361, %v1444
  %v1481 = vadd.f32 %v1362, %v1446
  %v1482 = vadd.f32 %v1363, %v1449
  %v1483 = vadd.f32 %v1364, %v1451
  %v1484 = vadd.f32 %v1365, %v1454
  %v1485 = vadd.f32 %v1366, %v1456
  %v1486 = vadd.f32 %v1367, %v1459
  %v1487 = vadd.f32 %v1368, %v1461
  %v1488 = vadd.f32 %v1369, %v1464
  %v1489 = vadd.f32 %v1370, %v1466
  %v1490 = vadd.f32 %v1371, %v1469
  %v1491 = vadd.f32 %v1372, %v1471
  %v1492 = vadd.f32 %v1373, %v1474
  %v1493 = vadd.f32 %v1374, %v1476
  %vm1494 = vcmask 64512
  %1495 = vst.msk [vmem:[%s3] sm:$0xff] %vm1494, %v1478
  %1496 = vst.msk [vmem:[%s3 + $0x8] sm:$0xff] %vm1494, %v1479
  %1497 = vst.msk [vmem:[%s3 + $0x10] sm:$0xff] %vm1494, %v1480
  %1498 = vst.msk [vmem:[%s3 + $0x18] sm:$0xff] %vm1494, %v1481
  %1499 = vst.msk [vmem:[%s3 + $0x20] sm:$0xff] %vm1494, %v1482
  %1500 = vst.msk [vmem:[%s3 + $0x28] sm:$0xff] %vm1494, %v1483
  %1501 = vst.msk [vmem:[%s3 + $0x30] sm:$0xff] %vm1494, %v1484
  %1502 = vst.msk [vmem:[%s3 + $0x38] sm:$0xff] %vm1494, %v1485
  %1503 = vst.msk [vmem:[%s3 + $0x40] sm:$0xff] %vm1494, %v1486
  %1504 = vst.msk [vmem:[%s3 + $0x48] sm:$0xff] %vm1494, %v1487
  %1505 = vst.msk [vmem:[%s3 + $0x50] sm:$0xff] %vm1494, %v1488
  %1506 = vst.msk [vmem:[%s3 + $0x58] sm:$0xff] %vm1494, %v1489
  %1507 = vst.msk [vmem:[%s3 + $0x60] sm:$0xff] %vm1494, %v1490
  %1508 = vst.msk [vmem:[%s3 + $0x68] sm:$0xff] %vm1494, %v1491
  %1509 = vst.msk [vmem:[%s3 + $0x70] sm:$0xff] %vm1494, %v1492
  %1510 = vst.msk [vmem:[%s3 + $0x78] sm:$0xff] %vm1494, %v1493
  // Predicated region
  $region14: #{tpu_custom_call.1} parent=0 // pred_check
    _
  $region15: #{tpu_custom_call.1} parent=0 // pred_check_branch
    %1512 = sbr.rel (0) target = $region17
  $region16: #{tpu_custom_call.1} parent=0 // pred_region
    _
  $region17: #{tpu_custom_call.1} parent=0 // pred_fallthru
    _
  // Predicated region
  $region18: #{tpu_custom_call.1} parent=0 // pred_check
    _
  $region19: #{tpu_custom_call.1} parent=0 // pred_check_branch
    %1514 = sbr.rel (0) target = $region21
  $region20: #{tpu_custom_call.1} parent=0 // pred_region
    _
  $region21: #{tpu_custom_call.1} parent=0 // pred_fallthru
    _

</llo_original>
